<compile_context>
chip_gen: v5e
topology: v5e:2x2
jax: 0.10.0
libtpu: 0.0.40
codegen_flags: <defaults>
</compile_context>

<pallas_src>
import jax
import jax.numpy as jnp
from jax.experimental import pallas as pl
from jax.experimental.pallas import tpu as pltpu

_VMEM_BUDGET = 24 * 1024 * 1024      # pipelined block budget, safe on v5e/v6e/v7x
_VMEM_LIMIT_CAP = 48 * 1024 * 1024   # never request more than this (v7x: 64 MiB VMEM)


def _round_up(x, m):
    return ((x + m - 1) // m) * m


def _largest_divisor_tile(total, quantum, max_tile):
    """Largest multiple of `quantum` <= max_tile that divides `total`.
    Falls back to the full extent when `total` is not a multiple of `quantum`."""
    if total % quantum != 0:
        return total
    t = max(quantum, (min(max_tile, total) // quantum) * quantum)
    while total % t:
        t -= quantum
    return t


def _vmem_limit(block_bytes):
    return int(min(_VMEM_LIMIT_CAP, max(16 * 1024 * 1024, block_bytes + (4 << 20))))


# ----------------------------------------------------------------------------
# Kernels
# ----------------------------------------------------------------------------
def _soft_label_loss_nchw_kernel(x_ref, t_ref, o_ref):
    # x_ref: (1, C, HW_T)  logits, channels on sublanes, positions on lanes.
    # t_ref: (1, HW_T, C)  soft labels in their native (rows, C) layout.
    # o_ref: (1, 1, 1, 1)  per-tile partial sum of -t * log_softmax(x).
    x = x_ref[0].astype(jnp.float32)                     # (C, HW_T)
    # Re-orient the label tile on-chip so both operands are lane-dense.
    # TODO(synk): pltpu.einshape may give a cheaper minor-dim relayout than jnp.transpose.
    t = jnp.transpose(t_ref[0].astype(jnp.float32))      # (HW_T, C) -> (C, HW_T)

    # log_softmax over the channel (sublane) axis.
    m = jnp.max(x, axis=0, keepdims=True)                # (1, HW_T)
    xs = x - m
    lse = jnp.log(jnp.sum(jnp.exp(xs), axis=0, keepdims=True))
    logp = xs - lse                                      # (C, HW_T)

    o_ref[...] = jnp.full(o_ref.shape, -jnp.sum(t * logp), dtype=jnp.float32)


def _soft_label_loss_rows_kernel(x_ref, t_ref, o_ref):
    # Row-major variant for inputs that are already (rows, C).
    x = x_ref[...].astype(jnp.float32)                   # (TR, C)
    t = t_ref[...].astype(jnp.float32)                   # (TR, C)
    m = jnp.max(x, axis=1, keepdims=True)
    xs = x - m
    lse = jnp.log(jnp.sum(jnp.exp(xs), axis=1, keepdims=True))
    o_ref[...] = jnp.full(o_ref.shape, -jnp.sum(t * (xs - lse)), dtype=jnp.float32)


# ----------------------------------------------------------------------------
# Drivers
# ----------------------------------------------------------------------------
def _soft_label_loss_nchw(x, t):
    """x: (N, C, HW) logits.  t: (N, HW, C) soft labels (free views, no copy)."""
    n, c, hw = x.shape
    x_item = jnp.dtype(x.dtype).itemsize
    t_item = jnp.dtype(t.dtype).itemsize
    # Double-buffered VMEM bytes per spatial position: the logits tile pads C
    # to a sublane multiple, the label tile pads C to a full 128-lane register.
    per_pos = 2 * (_round_up(c, 8) * x_item + _round_up(c, 128) * t_item)
    hw_tile = _largest_divisor_tile(hw, 128, max(128, _VMEM_BUDGET // per_pos))
    grid = (n, hw // hw_tile)

    partials = pl.pallas_call(
        _soft_label_loss_nchw_kernel,
        out_shape=jax.ShapeDtypeStruct((n, grid[1], 1, 1), jnp.float32),
        grid_spec=pltpu.PrefetchScalarGridSpec(
            num_scalar_prefetch=0,
            grid=grid,
            in_specs=[
                pl.BlockSpec((1, c, hw_tile), lambda i, j: (i, 0, j)),
                pl.BlockSpec((1, hw_tile, c), lambda i, j: (i, j, 0)),
            ],
            out_specs=pl.BlockSpec((1, 1, 1, 1), lambda i, j: (i, j, 0, 0)),
        ),
        compiler_params=pltpu.CompilerParams(
            dimension_semantics=("parallel", "parallel"),
            vmem_limit_bytes=_vmem_limit(per_pos * hw_tile),
        ),
    )(x, t)
    return jnp.sum(partials) / jnp.float32(n * hw)


def _soft_label_loss_rows(x, t):
    """x, t: (rows, C)."""
    rows, c = x.shape
    x_item = jnp.dtype(x.dtype).itemsize
    t_item = jnp.dtype(t.dtype).itemsize
    per_row = 2 * _round_up(c, 128) * (x_item + t_item)   # double-buffered, lane-padded
    row_tile = _largest_divisor_tile(rows, 8, max(8, _VMEM_BUDGET // per_row))
    grid = (rows // row_tile,)

    partials = pl.pallas_call(
        _soft_label_loss_rows_kernel,
        out_shape=jax.ShapeDtypeStruct((grid[0], 1, 1), jnp.float32),
        grid_spec=pltpu.PrefetchScalarGridSpec(
            num_scalar_prefetch=0,
            grid=grid,
            in_specs=[
                pl.BlockSpec((row_tile, c), lambda i: (i, 0)),
                pl.BlockSpec((row_tile, c), lambda i: (i, 0)),
            ],
            out_specs=pl.BlockSpec((1, 1, 1), lambda i: (i, 0, 0)),
        ),
        compiler_params=pltpu.CompilerParams(
            dimension_semantics=("parallel",),
            vmem_limit_bytes=_vmem_limit(per_row * row_tile),
        ),
    )(x, t)
    return jnp.sum(partials) / jnp.float32(rows)


def soft_label_loss(inp, target):
    """Mean soft-label cross entropy matching PyTorch SoftLabelLoss.forward."""
    if inp.ndim > 2:
        n, c = int(inp.shape[0]), int(inp.shape[1])
        hw = 1
        for d in inp.shape[2:]:
            hw *= int(d)
        x3 = inp.reshape(n, c, hw)              # free view of NCHW
        t3 = target.reshape(n, hw, c)           # free view of (N*HW, C) labels
        try:
            return _soft_label_loss_nchw(x3, t3)
        except Exception:
            # Safety net: if the lane-dense path fails to lower on some TPU
            # generation, fall back to the row-major kernel (one XLA transpose
            # of the logits, as in v1). Same numerics.
            x2 = jnp.transpose(x3, (0, 2, 1)).reshape(n * hw, c)
            return _soft_label_loss_rows(x2, target.reshape(n * hw, c))
    return _soft_label_loss_rows(inp, target.reshape(inp.shape))


# ----------------------------------------------------------------------------
# Reference + demo
# ----------------------------------------------------------------------------
def _reference(inp, target):
    if inp.ndim > 2:
        n, c = inp.shape[0], inp.shape[1]
        x = inp.reshape(n, c, -1).transpose(0, 2, 1).reshape(-1, c)
    else:
        x = inp
    x = x.astype(jnp.float32)
    t = target.reshape(x.shape).astype(jnp.float32)
    logp = jax.nn.log_softmax(x, axis=1)
    return jnp.mean(jnp.sum(-t * logp, axis=1))


if __name__ == "__main__":
    key = jax.random.PRNGKey(0)
    k1, k2, k3, k4 = jax.random.split(key, 4)

    # 4-D (NCHW) path — the main optimized kernel.
    N, C, H, W = 2, 4, 16, 16
    x = jax.random.normal(k1, (N, C, H, W), dtype=jnp.float32)
    # Soft labels for the flattened (N*H*W, C) rows; bf16 halves label traffic.
    target = jax.nn.softmax(
        jax.random.normal(k2, (N * H * W, C), dtype=jnp.float32), axis=1
    ).astype(jnp.bfloat16)

    loss = soft_label_loss(x, target)
    jax.block_until_ready(loss)
    ref = _reference(x, target)
    assert jnp.allclose(loss, ref, atol=1e-5, rtol=1e-5), (loss, ref)

    # 2-D path (input already (rows, C)).
    R2, C2 = 256, 8
    x2 = jax.random.normal(k3, (R2, C2), dtype=jnp.float32)
    t2 = jax.nn.softmax(jax.random.normal(k4, (R2, C2), dtype=jnp.float32), axis=1)
    loss2 = soft_label_loss(x2, t2)
    jax.block_until_ready(loss2)
    ref2 = _reference(x2, t2)
    assert jnp.allclose(loss2, ref2, atol=1e-5, rtol=1e-5), (loss2, ref2)

    print("KERNEL_OK")
</pallas_src>

<mosaic_0001>
module attributes {stable_mosaic.version = 11 : i64} {
  func.func @_soft_label_loss_nchw_kernel(%arg0: i32, %arg1: i32, %arg2: memref<1x4x256xf32, #tpu.memory_space<vmem>>, %arg3: memref<1x256x4xbf16, #tpu.memory_space<vmem>>, %arg4: memref<1x1x1x1xf32, #tpu.memory_space<vmem>>) attributes {dimension_semantics = [#tpu.dimension_semantics<parallel>, #tpu.dimension_semantics<parallel>], iteration_bounds = array<i64: 2, 1>, scalar_prefetch = 0 : i64, scratch_operands = 0 : i64, tpu.core_type = #tpu.core_type<tc>, window_params = [{transform_indices = @transform_0, window_bounds = array<i64: 1, 4, 256>}, {transform_indices = @transform_1, window_bounds = array<i64: 1, 256, 4>}, {transform_indices = @transform_2, window_bounds = array<i64: 1, 1, 1, 1>}]} {
    %c0 = arith.constant 0 : index
    %c0_0 = arith.constant 0 : index
    %c0_1 = arith.constant 0 : index
    %0 = vector.load %arg2[%c0, %c0_0, %c0_1] : memref<1x4x256xf32, #tpu.memory_space<vmem>>, vector<1x4x256xf32>
    %1 = vector.shape_cast %0 : vector<1x4x256xf32> to vector<4x256xf32>
    %c0_2 = arith.constant 0 : index
    %c0_3 = arith.constant 0 : index
    %c0_4 = arith.constant 0 : index
    %2 = vector.load %arg3[%c0_2, %c0_3, %c0_4] : memref<1x256x4xbf16, #tpu.memory_space<vmem>>, vector<1x256x4xbf16>
    %3 = vector.shape_cast %2 : vector<1x256x4xbf16> to vector<256x4xbf16>
    %4 = arith.extf %3 : vector<256x4xbf16> to vector<256x4xf32>
    %5 = tpu.transpose %4, [1, 0] : vector<256x4xf32> -> vector<4x256xf32>
    %cst = arith.constant dense<0xFF800000> : vector<256xf32>
    %6 = vector.multi_reduction <maximumf>, %1, %cst [0] : vector<4x256xf32> to vector<256xf32>
    %7 = vector.shape_cast %6 : vector<256xf32> to vector<1x256xf32>
    %8 = vector.broadcast %7 : vector<1x256xf32> to vector<4x256xf32>
    %9 = arith.subf %1, %8 : vector<4x256xf32>
    %10 = math.exp %9 : vector<4x256xf32>
    %cst_5 = arith.constant dense<0.000000e+00> : vector<256xf32>
    %11 = vector.multi_reduction <add>, %10, %cst_5 [0] : vector<4x256xf32> to vector<256xf32>
    %12 = vector.shape_cast %11 : vector<256xf32> to vector<1x256xf32>
    %13 = math.log %12 : vector<1x256xf32>
    %14 = vector.broadcast %13 : vector<1x256xf32> to vector<4x256xf32>
    %15 = arith.subf %9, %14 : vector<4x256xf32>
    %16 = arith.mulf %5, %15 : vector<4x256xf32>
    %17 = vector.shape_cast %16 : vector<4x256xf32> to vector<1x4x256xf32>
    %cst_6 = arith.constant dense<0.000000e+00> : vector<1xf32>
    %18 = vector.multi_reduction <add>, %17, %cst_6 [1, 2] : vector<1x4x256xf32> to vector<1xf32>
    %19 = vector.shape_cast %18 : vector<1xf32> to vector<1x1x1xf32>
    %20 = vector.extract %19[0, 0, 0] : f32 from vector<1x1x1xf32>
    %cst_7 = arith.constant 0.000000e+00 : f32
    %21 = arith.subf %cst_7, %20 : f32
    %22 = vector.broadcast %21 : f32 to vector<1x1x1x1xf32>
    %c0_8 = arith.constant 0 : index
    %c0_9 = arith.constant 0 : index
    %c0_10 = arith.constant 0 : index
    %c0_11 = arith.constant 0 : index
    %23 = vector.load %arg4[%c0_8, %c0_9, %c0_10, %c0_11] : memref<1x1x1x1xf32, #tpu.memory_space<vmem>>, vector<1x1x1x1xf32>
    tpu.vector_store %arg4[%c0_8, %c0_9, %c0_10, %c0_11], %22 {strides = array<i32>} : memref<1x1x1x1xf32, #tpu.memory_space<vmem>>, vector<1x1x1x1xf32>,
    return
  }
  func.func @transform_0(%arg0: i32, %arg1: i32) -> (i32, i32, i32) {
    %c0_i32 = arith.constant 0 : i32
    %c0_i32_0 = arith.constant 0 : i32
    return %arg0, %c0_i32, %arg1 : i32, i32, i32
  }
  func.func @transform_1(%arg0: i32, %arg1: i32) -> (i32, i32, i32) {
    %c0_i32 = arith.constant 0 : i32
    %c0_i32_0 = arith.constant 0 : i32
    return %arg0, %arg1, %c0_i32 : i32, i32, i32
  }
  func.func @transform_2(%arg0: i32, %arg1: i32) -> (i32, i32, i32, i32) {
    %c0_i32 = arith.constant 0 : i32
    %c0_i32_0 = arith.constant 0 : i32
    %c0_i32_1 = arith.constant 0 : i32
    return %arg0, %arg1, %c0_i32, %c0_i32_0 : i32, i32, i32, i32
  }
}

module attributes {stable_mosaic.version = 11 : i64} {
  func.func @_soft_label_loss_rows_kernel(%arg0: i32, %arg1: memref<512x4xf32, #tpu.memory_space<vmem>>, %arg2: memref<512x4xbf16, #tpu.memory_space<vmem>>, %arg3: memref<1x1x1xf32, #tpu.memory_space<vmem>>) attributes {dimension_semantics = [#tpu.dimension_semantics<parallel>], iteration_bounds = array<i64: 1>, scalar_prefetch = 0 : i64, scratch_operands = 0 : i64, tpu.core_type = #tpu.core_type<tc>, window_params = [{transform_indices = @transform_0, window_bounds = array<i64: 512, 4>}, {transform_indices = @transform_1, window_bounds = array<i64: 512, 4>}, {transform_indices = @transform_2, window_bounds = array<i64: 1, 1, 1>}]} {
    %c0 = arith.constant 0 : index
    %c0_0 = arith.constant 0 : index
    %0 = vector.load %arg1[%c0, %c0_0] : memref<512x4xf32, #tpu.memory_space<vmem>>, vector<512x4xf32>
    %c0_1 = arith.constant 0 : index
    %c0_2 = arith.constant 0 : index
    %1 = vector.load %arg2[%c0_1, %c0_2] : memref<512x4xbf16, #tpu.memory_space<vmem>>, vector<512x4xbf16>
    %2 = arith.extf %1 : vector<512x4xbf16> to vector<512x4xf32>
    %cst = arith.constant dense<0xFF800000> : vector<512xf32>
    %3 = vector.multi_reduction <maximumf>, %0, %cst [1] : vector<512x4xf32> to vector<512xf32>
    %4 = vector.shape_cast %3 : vector<512xf32> to vector<512x1xf32>
    %5 = vector.broadcast %4 : vector<512x1xf32> to vector<512x4xf32>
    %6 = arith.subf %0, %5 : vector<512x4xf32>
    %7 = math.exp %6 : vector<512x4xf32>
    %cst_3 = arith.constant dense<0.000000e+00> : vector<512xf32>
    %8 = vector.multi_reduction <add>, %7, %cst_3 [1] : vector<512x4xf32> to vector<512xf32>
    %9 = vector.shape_cast %8 : vector<512xf32> to vector<512x1xf32>
    %10 = math.log %9 : vector<512x1xf32>
    %11 = vector.broadcast %10 : vector<512x1xf32> to vector<512x4xf32>
    %12 = arith.subf %6, %11 : vector<512x4xf32>
    %13 = arith.mulf %2, %12 : vector<512x4xf32>
    %14 = vector.shape_cast %13 : vector<512x4xf32> to vector<1x512x4xf32>
    %cst_4 = arith.constant dense<0.000000e+00> : vector<1xf32>
    %15 = vector.multi_reduction <add>, %14, %cst_4 [1, 2] : vector<1x512x4xf32> to vector<1xf32>
    %16 = vector.shape_cast %15 : vector<1xf32> to vector<1x1x1xf32>
    %17 = vector.extract %16[0, 0, 0] : f32 from vector<1x1x1xf32>
    %cst_5 = arith.constant 0.000000e+00 : f32
    %18 = arith.subf %cst_5, %17 : f32
    %19 = vector.broadcast %18 : f32 to vector<1x1x1xf32>
    %c0_6 = arith.constant 0 : index
    %c0_7 = arith.constant 0 : index
    %c0_8 = arith.constant 0 : index
    %20 = vector.load %arg3[%c0_6, %c0_7, %c0_8] : memref<1x1x1xf32, #tpu.memory_space<vmem>>, vector<1x1x1xf32>
    tpu.vector_store %arg3[%c0_6, %c0_7, %c0_8], %19 {strides = array<i32>} : memref<1x1x1xf32, #tpu.memory_space<vmem>>, vector<1x1x1xf32>,
    return
  }
  func.func @transform_0(%arg0: i32) -> (i32, i32) {
    %c0_i32 = arith.constant 0 : i32
    %c0_i32_0 = arith.constant 0 : i32
    return %arg0, %c0_i32 : i32, i32
  }
  func.func @transform_1(%arg0: i32) -> (i32, i32) {
    %c0_i32 = arith.constant 0 : i32
    %c0_i32_0 = arith.constant 0 : i32
    return %arg0, %c0_i32 : i32, i32
  }
  func.func @transform_2(%arg0: i32) -> (i32, i32, i32) {
    %c0_i32 = arith.constant 0 : i32
    %c0_i32_0 = arith.constant 0 : i32
    %c0_i32_1 = arith.constant 0 : i32
    return %arg0, %c0_i32, %c0_i32_0 : i32, i32, i32
  }
}

</mosaic_0001>

<llo_original>
// kernel: tpu_custom_call.1
$region0: #{tpu_custom_call.1}
  #allocation0 [shape = 'u32[]', space=smem, size = 0x4, offset = 0x4, fixed_abs, tag = 'smem constant byte address 0x4 - core index']
  #allocation1 [shape = 'u32[72,128]{1,0:T(1,128)}', space=vmem, size = 0x9000, scoped, tag = 'internal scratch']
  %s0 = inlined_call_operand.vmem [shape: f32[2,4,256], index: 0, kind: input, shape index: {}]
  %s1 = inlined_call_operand.vmem [shape: bf16[2,256,4], index: 1, kind: input, shape index: {}]
  %s2 = inlined_call_operand.vmem [shape: f32[2,1,1,1], index: 2, kind: output, shape index: {}]
  %s3 = sld [smem:[#allocation0]]
  $region41: #{tpu_custom_call.1} parent=0
    _
  %s5 = ssub.s32 1, %s3
  %s6 = scalar_select 0, %s5, %s3
  loop: start=0, step=1, limit=4
  $region2: #{tpu_custom_call.1} parent=0 // loop_pre_header
    _
  $region3: #{tpu_custom_call.1} parent=0 // loop_header
    %s8 = sphi 0, %s12
    %p9 = scmp.ge.s32.totalorder %s8, 4
    %s15 = sphi 0, %s27
    %s16 = sphi 0, %s23
    %s17 = sphi 0, %s15
    %s18 = sphi 0, %s16
    %s19 = sphi 0, %s17
    %s20 = sphi 0, %s18
    %s32 = sphi 0, %s34
    %s35 = sphi 0, %s32
    %s36 = sphi 0, %s35
    %s52 = sphi 0, %s36
    %s60 = sphi 0, %s62
    %s63 = sphi 0, %s60
    %s64 = sphi 0, %s63
    %s80 = sphi 0, %s64
    %s88 = sphi 0, %s90
    %s91 = sphi 0, %s88
    %s92 = sphi 0, %s91
    %s108 = sphi 0, %s92
  $region4: #{tpu_custom_call.1} parent=0 // loop_header_branch
    %11 = sbr.rel (%p9) target = $region8
  $region5: #{tpu_custom_call.1} parent=0 // loop_body
    %s13 = ssub.s32 %s8, 1
    %s14 = ssub.s32 %s8, 2
    %s21 = sadd.s32 1, %s16
    %p22 = scmp.ge.s32.totalorder %s21, 1
    %s23 = scalar_select %p22, 0, %s21
    %s24 = sadd.s32 1, %s15
    %s25 = scalar_select %p22, %s24, %s15
    %p26 = scmp.ge.s32.totalorder %s25, 2
    %s27 = scalar_select %p26, 0, %s25
    %s28 = ssub.s32 %s15, %s27
    %s29 = ssub.s32 %s16, %s23
    %s30 = sor.u32 %s28, %s29
    %p31 = scmp.eq.s32.totalorder %s30, 0
    %s33 = sadd.s32 %s32, 1
    %s34 = scalar_select %p31, %s32, %s33
    %p37 = pneg %p31
    %p38 = scmp.eq.s32.totalorder %s8, 1
    %p39 = por %p37, %p38
    %p40 = scmp.ne.s32.totalorder %s32, %s35
    %p41 = scmp.eq.s32.totalorder %s8, 0
    %p42 = por %p40, %p41
    %p43 = scmp.ne.s32.totalorder %s32, %s35
    %p44 = scmp.eq.s32.totalorder %s13, 1
    %p45 = por %p43, %p44
    %p46 = scmp.ne.s32.totalorder %s35, %s36
    %p47 = scmp.eq.s32.totalorder %s13, 0
    %p48 = por %p46, %p47
    %p49 = scmp.ne.s32.totalorder %s35, %s36
    %p50 = scmp.eq.s32.totalorder %s14, 1
    %p51 = por %p49, %p50
    %p53 = scmp.ne.s32.totalorder %s36, %s52
    %p54 = scmp.eq.s32.totalorder %s14, 0
    %p55 = por %p53, %p54
    %s56 = ssub.s32 %s15, %s27
    %s57 = ssub.s32 %s16, %s23
    %s58 = sor.u32 %s56, %s57
    %p59 = scmp.eq.s32.totalorder %s58, 0
    %s61 = sadd.s32 %s60, 1
    %s62 = scalar_select %p59, %s60, %s61
    %p65 = pneg %p59
    %p66 = scmp.eq.s32.totalorder %s8, 1
    %p67 = por %p65, %p66
    %p68 = scmp.ne.s32.totalorder %s60, %s63
    %p69 = scmp.eq.s32.totalorder %s8, 0
    %p70 = por %p68, %p69
    %p71 = scmp.ne.s32.totalorder %s60, %s63
    %p72 = scmp.eq.s32.totalorder %s13, 1
    %p73 = por %p71, %p72
    %p74 = scmp.ne.s32.totalorder %s63, %s64
    %p75 = scmp.eq.s32.totalorder %s13, 0
    %p76 = por %p74, %p75
    %p77 = scmp.ne.s32.totalorder %s63, %s64
    %p78 = scmp.eq.s32.totalorder %s14, 1
    %p79 = por %p77, %p78
    %p81 = scmp.ne.s32.totalorder %s64, %s80
    %p82 = scmp.eq.s32.totalorder %s14, 0
    %p83 = por %p81, %p82
    %s84 = ssub.s32 %s15, %s27
    %s85 = ssub.s32 %s16, %s23
    %s86 = sor.u32 %s84, %s85
    %p87 = scmp.eq.s32.totalorder %s86, 0
    %s89 = sadd.s32 %s88, 1
    %s90 = scalar_select %p87, %s88, %s89
    %p93 = pneg %p87
    %p94 = scmp.eq.s32.totalorder %s8, 1
    %p95 = por %p93, %p94
    %p96 = scmp.ne.s32.totalorder %s88, %s91
    %p97 = scmp.eq.s32.totalorder %s8, 0
    %p98 = por %p96, %p97
    %p99 = scmp.ne.s32.totalorder %s88, %s91
    %p100 = scmp.eq.s32.totalorder %s13, 1
    %p101 = por %p99, %p100
    %p102 = scmp.ne.s32.totalorder %s91, %s92
    %p103 = scmp.eq.s32.totalorder %s13, 0
    %p104 = por %p102, %p103
    %p105 = scmp.ne.s32.totalorder %s91, %s92
    %p106 = scmp.eq.s32.totalorder %s14, 1
    %p107 = por %p105, %p106
    %p109 = scmp.ne.s32.totalorder %s92, %s108
    %p110 = scmp.eq.s32.totalorder %s14, 0
    %p111 = por %p109, %p110
    %p112 = scmp.le.s32.totalorder 1, %s8
    %p113 = scmp.lt.s32.totalorder %s8, 3
    %p114 = pnand %p112, %p113
    %p115 = pneg %p114
    // Predicated region
    $region9: #{tpu_custom_call.1} parent=5 // pred_check
      _
    $region10: #{tpu_custom_call.1} parent=5 // pred_check_branch
      %117 = sbr.rel (%p114) target = $region12
    $region11: #{tpu_custom_call.1} parent=5 // pred_region
      %s118 = ssub.s32 %s8, 1
    $region12: #{tpu_custom_call.1} parent=5 // pred_fallthru
      _
    %p119 = scmp.lt.s32.totalorder %s8, 2
    // Predicated region
    $region13: #{tpu_custom_call.1} parent=5 // pred_check
      %p120 = pneg %p119
    $region14: #{tpu_custom_call.1} parent=5 // pred_check_branch
      %122 = sbr.rel (%p120) target = $region16
    $region15: #{tpu_custom_call.1} parent=5 // pred_region
      // Predicated region
      $region17: #{tpu_custom_call.1} parent=15 // pred_check
        %p123 = pneg %p42
      $region18: #{tpu_custom_call.1} parent=15 // pred_check_branch
        %125 = sbr.rel (%p123) target = $region20
      $region19: #{tpu_custom_call.1} parent=15 // pred_region
        %s126 = smul.u32 2, %s16
        %p127 = scmp.lt.s32.totalorder %s15, 1
        %s128 = scalar_select %p127, %s15, 1
        %p129 = scmp.lt.s32.totalorder %s126, 1
        %s130 = scalar_select %p129, %s126, 1
        %s131 = smul.addr %s128, 2
        %s132 = sadd.s32 %s130, %s131
        %s133 = smul.addr %s132, 4
        %s134 = scalar_lea.vmem %s0, %s133
        %s135 = smul.u32 2, %s16
      $region20: #{tpu_custom_call.1} parent=15 // pred_fallthru
        _
      // Predicated region
      $region21: #{tpu_custom_call.1} parent=15 // pred_check
        %p136 = pneg %p70
      $region22: #{tpu_custom_call.1} parent=15 // pred_check_branch
        %138 = sbr.rel (%p136) target = $region24
      $region23: #{tpu_custom_call.1} parent=15 // pred_region
        %s139 = smul.u32 32, %s16
        %p140 = scmp.lt.s32.totalorder %s15, 1
        %s141 = scalar_select %p140, %s15, 1
        %p142 = scmp.lt.s32.totalorder %s139, 31
        %s143 = scalar_select %p142, %s139, 31
        %s144 = smul.addr %s141, 32
        %s145 = sadd.s32 %s143, %s144
        %s146 = smul.addr %s145, 4
        %s147 = scalar_lea.vmem %s1, %s146
        %s148 = smul.u32 32, %s16
      $region24: #{tpu_custom_call.1} parent=15 // pred_fallthru
        _
    $region16: #{tpu_custom_call.1} parent=5 // pred_fallthru
      _
    %p149 = scmp.le.s32.totalorder 1, %s8
    %p150 = scmp.lt.s32.totalorder %s8, 3
    %p151 = pnand %p149, %p150
    %p152 = pneg %p151
    // Predicated region
    $region25: #{tpu_custom_call.1} parent=5 // pred_check
      _
    $region26: #{tpu_custom_call.1} parent=5 // pred_check_branch
      %154 = sbr.rel (%p151) target = $region28
    $region27: #{tpu_custom_call.1} parent=5 // pred_region
      %s155 = ssub.s32 %s8, 1
      %s156 = smul.u32 2, %s18
      %p157 = scmp.lt.s32.totalorder %s17, 1
      %s158 = scalar_select %p157, %s17, 1
      %p159 = scmp.lt.s32.totalorder %s156, 1
      %s160 = scalar_select %p159, %s156, 1
      %s161 = smul.addr %s158, 2
      %s162 = sadd.s32 %s160, %s161
      %s163 = smul.addr %s162, 4
      %s164 = scalar_lea.vmem %s0, %s163
      %p165 = pneg %p48
      %p166 = pneg %p45
      %s167 = smul.u32 32, %s18
      %p168 = scmp.lt.s32.totalorder %s17, 1
      %s169 = scalar_select %p168, %s17, 1
      %p170 = scmp.lt.s32.totalorder %s167, 31
      %s171 = scalar_select %p170, %s167, 31
      %s172 = smul.addr %s169, 32
      %s173 = sadd.s32 %s171, %s172
      %s174 = smul.addr %s173, 4
      %s175 = scalar_lea.vmem %s1, %s174
      %p176 = pneg %p76
      %p177 = pneg %p73
      %p178 = pneg %p104
      %p179 = pneg %p101
      %p180 = scmp.lt.s32.totalorder %s17, 1
      %s181 = scalar_select %p180, %s17, 1
      %p182 = scmp.lt.s32.totalorder %s18, 0
      %s183 = scalar_select %p182, %s18, 0
      %s184 = sadd.s32 %s183, %s181
      %s185 = scalar_lea.vmem %s2, %s184
      %s186 = smul.u32 2, %s18
      %p187 = scmp.lt.s32.totalorder %s17, 1
      %s188 = scalar_select %p187, %s17, 1
      %p189 = scmp.lt.s32.totalorder %s186, 1
      %s190 = scalar_select %p189, %s186, 1
      %s191 = smul.addr %s188, 2
      %s192 = sadd.s32 %s190, %s191
      %s193 = smul.addr %s192, 4
      %s194 = scalar_lea.vmem %s0, %s193
      %s195 = smul.u32 2, %s18
      %s196 = smul.u32 32, %s18
      %p197 = scmp.lt.s32.totalorder %s17, 1
      %s198 = scalar_select %p197, %s17, 1
      %p199 = scmp.lt.s32.totalorder %s196, 31
      %s200 = scalar_select %p199, %s196, 31
      %s201 = smul.addr %s198, 32
      %s202 = sadd.s32 %s200, %s201
      %s203 = smul.addr %s202, 4
      %s204 = scalar_lea.vmem %s1, %s203
      %s205 = smul.u32 32, %s18
      %p206 = scmp.lt.s32.totalorder %s17, 1
      %s207 = scalar_select %p206, %s17, 1
      %p208 = scmp.lt.s32.totalorder %s18, 0
      %s209 = scalar_select %p208, %s18, 0
      %s210 = sadd.s32 %s209, %s207
      %s211 = scalar_lea.vmem %s2, %s210
      %v212 = vld [vmem:[%s194] sm:$0xff]
      %v213 = vld [vmem:[%s204] sm:$0xf]
      %v214 = vld [vmem:[%s204 + $0x4] sm:$0xf]
      %v215 = vld [vmem:[%s204 + $0x8] sm:$0xf]
      %v216 = vld [vmem:[%s204 + $0xc] sm:$0xf]
      %v217 = vld [vmem:[%s204 + $0x10] sm:$0xf]
      %v218 = vld [vmem:[%s204 + $0x14] sm:$0xf]
      %v219 = vld [vmem:[%s204 + $0x18] sm:$0xf]
      %v220 = vld [vmem:[%s204 + $0x1c] sm:$0xf]
      %v221 = vld [vmem:[%s204 + $0x20] sm:$0xf]
      %v222 = vld [vmem:[%s204 + $0x24] sm:$0xf]
      %v223 = vld [vmem:[%s204 + $0x28] sm:$0xf]
      %v224 = vld [vmem:[%s204 + $0x2c] sm:$0xf]
      %v225 = vld [vmem:[%s204 + $0x30] sm:$0xf]
      %v226 = vld [vmem:[%s204 + $0x34] sm:$0xf]
      %v227 = vld [vmem:[%s204 + $0x38] sm:$0xf]
      %v228 = vld [vmem:[%s204 + $0x3c] sm:$0xf]
      %v229 = vld [vmem:[%s204 + $0x40] sm:$0xf]
      %v230 = vld [vmem:[%s204 + $0x44] sm:$0xf]
      %v231 = vld [vmem:[%s204 + $0x48] sm:$0xf]
      %v232 = vld [vmem:[%s204 + $0x4c] sm:$0xf]
      %v233 = vld [vmem:[%s204 + $0x50] sm:$0xf]
      %v234 = vld [vmem:[%s204 + $0x54] sm:$0xf]
      %v235 = vld [vmem:[%s204 + $0x58] sm:$0xf]
      %v236 = vld [vmem:[%s204 + $0x5c] sm:$0xf]
      %v237 = vld [vmem:[%s204 + $0x60] sm:$0xf]
      %v238 = vld [vmem:[%s204 + $0x64] sm:$0xf]
      %v239 = vld [vmem:[%s204 + $0x68] sm:$0xf]
      %v240 = vld [vmem:[%s204 + $0x6c] sm:$0xf]
      %v241 = vld [vmem:[%s204 + $0x70] sm:$0xf]
      %v242 = vld [vmem:[%s204 + $0x74] sm:$0xf]
      %v243 = vld [vmem:[%s204 + $0x78] sm:$0xf]
      %v244 = vld [vmem:[%s204 + $0x7c] sm:$0xf]
      %v245 = vunpack.c.l.bf16 %v213
      %v246 = vunpack.c.l.bf16 %v214
      %v247 = vunpack.c.l.bf16 %v215
      %v248 = vunpack.c.l.bf16 %v216
      %v249 = vunpack.c.l.bf16 %v217
      %v250 = vunpack.c.l.bf16 %v218
      %v251 = vunpack.c.l.bf16 %v219
      %v252 = vunpack.c.l.bf16 %v220
      %v253 = vunpack.c.l.bf16 %v221
      %v254 = vunpack.c.l.bf16 %v222
      %v255 = vunpack.c.l.bf16 %v223
      %v256 = vunpack.c.l.bf16 %v224
      %v257 = vunpack.c.l.bf16 %v225
      %v258 = vunpack.c.l.bf16 %v226
      %v259 = vunpack.c.l.bf16 %v227
      %v260 = vunpack.c.l.bf16 %v228
      %v261 = vunpack.c.l.bf16 %v229
      %v262 = vunpack.c.l.bf16 %v230
      %v263 = vunpack.c.l.bf16 %v231
      %v264 = vunpack.c.l.bf16 %v232
      %v265 = vunpack.c.l.bf16 %v233
      %v266 = vunpack.c.l.bf16 %v234
      %v267 = vunpack.c.l.bf16 %v235
      %v268 = vunpack.c.l.bf16 %v236
      %v269 = vunpack.c.l.bf16 %v237
      %v270 = vunpack.c.l.bf16 %v238
      %v271 = vunpack.c.l.bf16 %v239
      %v272 = vunpack.c.l.bf16 %v240
      %v273 = vunpack.c.l.bf16 %v241
      %v274 = vunpack.c.l.bf16 %v242
      %v275 = vunpack.c.l.bf16 %v243
      %v276 = vunpack.c.l.bf16 %v244
      %277 = vxpose.xlu0.b32.start [1/16] %v245, 128
      %278 = vxpose.xlu0.b32.cont [2/16] %v246, 128
      %279 = vxpose.xlu0.b32.cont [3/16] %v247, 128
      %280 = vxpose.xlu0.b32.cont [4/16] %v248, 128
      %281 = vxpose.xlu0.b32.cont [5/16] %v249, 128
      %282 = vxpose.xlu0.b32.cont [6/16] %v250, 128
      %283 = vxpose.xlu0.b32.cont [7/16] %v251, 128
      %284 = vxpose.xlu0.b32.cont [8/16] %v252, 128
      %285 = vxpose.xlu0.b32.cont [9/16] %v253, 128
      %286 = vxpose.xlu0.b32.cont [10/16] %v254, 128
      %287 = vxpose.xlu0.b32.cont [11/16] %v255, 128
      %288 = vxpose.xlu0.b32.cont [12/16] %v256, 128
      %289 = vxpose.xlu0.b32.cont [13/16] %v257, 128
      %290 = vxpose.xlu0.b32.cont [14/16] %v258, 128
      %291 = vxpose.xlu0.b32.cont [15/16] %v259, 128
      %292 = vxpose.xlu0.b32.end [16/16] %v260, 128
      %v293 = vpop.trf.xlu0
      %v294 = vpop.trf.xlu0
      %v295 = vpop.trf.xlu0
      %v296 = vpop.trf.xlu0
      %v297 = vpop.trf.xlu0
      %v298 = vpop.trf.xlu0
      %v299 = vpop.trf.xlu0
      %v300 = vpop.trf.xlu0
      %v301 = vpop.trf.xlu0
      %v302 = vpop.trf.xlu0
      %v303 = vpop.trf.xlu0
      %v304 = vpop.trf.xlu0
      %v305 = vpop.trf.xlu0
      %v306 = vpop.trf.xlu0
      %v307 = vpop.trf.xlu0
      %v308 = vpop.trf.xlu0
      %309 = vxpose.xlu0.b32.start [1/16] %v261, 128
      %310 = vxpose.xlu0.b32.cont [2/16] %v262, 128
      %311 = vxpose.xlu0.b32.cont [3/16] %v263, 128
      %312 = vxpose.xlu0.b32.cont [4/16] %v264, 128
      %313 = vxpose.xlu0.b32.cont [5/16] %v265, 128
      %314 = vxpose.xlu0.b32.cont [6/16] %v266, 128
      %315 = vxpose.xlu0.b32.cont [7/16] %v267, 128
      %316 = vxpose.xlu0.b32.cont [8/16] %v268, 128
      %317 = vxpose.xlu0.b32.cont [9/16] %v269, 128
      %318 = vxpose.xlu0.b32.cont [10/16] %v270, 128
      %319 = vxpose.xlu0.b32.cont [11/16] %v271, 128
      %320 = vxpose.xlu0.b32.cont [12/16] %v272, 128
      %321 = vxpose.xlu0.b32.cont [13/16] %v273, 128
      %322 = vxpose.xlu0.b32.cont [14/16] %v274, 128
      %323 = vxpose.xlu0.b32.cont [15/16] %v275, 128
      %324 = vxpose.xlu0.b32.end [16/16] %v276, 128
      %v325 = vpop.trf.xlu0
      %v326 = vpop.trf.xlu0
      %v327 = vpop.trf.xlu0
      %v328 = vpop.trf.xlu0
      %v329 = vpop.trf.xlu0
      %v330 = vpop.trf.xlu0
      %v331 = vpop.trf.xlu0
      %v332 = vpop.trf.xlu0
      %v333 = vpop.trf.xlu0
      %v334 = vpop.trf.xlu0
      %v335 = vpop.trf.xlu0
      %v336 = vpop.trf.xlu0
      %v337 = vpop.trf.xlu0
      %v338 = vpop.trf.xlu0
      %v339 = vpop.trf.xlu0
      %v340 = vpop.trf.xlu0
      %342 = vst [vmem:[#allocation1] ss:$2 sm:$0xff] %v212
      %v343 = vld.sshfl [vmem:[#allocation1] sm:$0xff pattern:$0x75316420]
      %v344 = vld.sshfl [vmem:[#allocation1 + $0x8] sm:$0xff pattern:$0x75316420]
      %vm347 = vcmask 1043456
      %v348 = vsel %vm347, %v343, -inf
      %v349 = vrot.slane %v348, 4
      %v350 = vmax.f32 %v348, %v349
      %v351 = vrot.slane %v350, 2
      %v352 = vmax.f32 %v350, %v351
      %v353 = vrot.slane %v352, 1
      %v354 = vmax.f32 %v352, %v353
      %v355 = vsel %vm347, %v344, -inf
      %v356 = vrot.slane %v355, 4
      %v357 = vmax.f32 %v355, %v356
      %v358 = vrot.slane %v357, 2
      %v359 = vmax.f32 %v357, %v358
      %v360 = vrot.slane %v359, 1
      %v361 = vmax.f32 %v359, %v360
      %v364 = vrot.slane %v361, 4
      %v365 = vsel %vm347, %v354, %v364
      %v367 = vsub.f32 %v212, %v365
      %v368 = vmul.f32 %v367, 1.442695
      %v369 = vpow.pop %v368
      %371 = vst [vmem:[#allocation1] ss:$2 sm:$0xff] %v369
      %v372 = vld.sshfl [vmem:[#allocation1] sm:$0xff pattern:$0x75316420]
      %v373 = vld.sshfl [vmem:[#allocation1 + $0x8] sm:$0xff pattern:$0x75316420]
      %v376 = vsel %vm347, %v372, 0.0
      %v377 = vrot.slane %v376, 4
      %v378 = vadd.f32 %v376, %v377
      %v379 = vrot.slane %v378, 2
      %v380 = vadd.f32 %v378, %v379
      %v381 = vrot.slane %v380, 1
      %v382 = vadd.f32 %v380, %v381
      %v383 = vsel %vm347, %v373, 0.0
      %v384 = vrot.slane %v383, 4
      %v385 = vadd.f32 %v383, %v384
      %v386 = vrot.slane %v385, 2
      %v387 = vadd.f32 %v385, %v386
      %v388 = vrot.slane %v387, 1
      %v389 = vadd.f32 %v387, %v388
      %v390 = vlog2.pop %v382
      %v391 = vmul.f32 %v390, 0.6931472
      %v392 = vlog2.pop %v389
      %v393 = vmul.f32 %v392, 0.6931472
      %v396 = vrot.slane %v393, 4
      %v397 = vsel %vm347, %v391, %v396
      %v399 = vsub.f32 %v367, %v397
      %401 = vst [vmem:[#allocation1] ss:$2 sm:$0xff] %v399
      %v402 = vld.sshfl [vmem:[#allocation1] sm:$0xff pattern:$0x75316420]
      %v403 = vld.sshfl [vmem:[#allocation1 + $0x8] sm:$0xff pattern:$0x75316420]
      %v406 = vmul.f32 %v293, %v402
      %v407 = vmul.f32 %v325, %v403
      %v408 = vsel %vm347, %v406, 0.0
      %v409 = vsel %vm347, %v407, 0.0
      %v410 = vadd.f32 %v408, %v409
      %411 = vadd.xlane.f32.xlu0 %v410
      %v412 = vpop.xlane.xlu0 %411
      %v413 = vrot.slane %v412, 4
      %v414 = vadd.f32 %v412, %v413
      %v415 = vrot.slane %v414, 2
      %v416 = vadd.f32 %v414, %v415
      %v417 = vrot.slane %v416, 1
      %v418 = vadd.f32 %v416, %v417
      %s419 = vtos %v418
      %s420 = ssub.f32 0.0, %s419
      %v421 = vstv %s420
      %vm422 = vcmask 0
      %423 = vst.msk [vmem:[%s211] sm:$0x1] %vm422, %v421
      %p424 = scmp.lt.s32.totalorder %s17, 1
      %s425 = scalar_select %p424, %s17, 1
      %p426 = scmp.lt.s32.totalorder %s18, 0
      %s427 = scalar_select %p426, %s18, 0
      %s428 = sadd.s32 %s427, %s425
      %s429 = scalar_lea.vmem %s2, %s428
      // Predicated region
      $region29: #{tpu_custom_call.1} parent=27 // pred_check
        %p430 = pneg %p101
      $region30: #{tpu_custom_call.1} parent=27 // pred_check_branch
        %432 = sbr.rel (%p430) target = $region32
      $region31: #{tpu_custom_call.1} parent=27 // pred_region
        _
      $region32: #{tpu_custom_call.1} parent=27 // pred_fallthru
        _
    $region28: #{tpu_custom_call.1} parent=5 // pred_fallthru
      _
    %p433 = scmp.le.s32.totalorder 2, %s8
    // Predicated region
    $region33: #{tpu_custom_call.1} parent=5 // pred_check
      %p434 = pneg %p433
    $region34: #{tpu_custom_call.1} parent=5 // pred_check_branch
      %436 = sbr.rel (%p434) target = $region36
    $region35: #{tpu_custom_call.1} parent=5 // pred_region
      %s437 = ssub.s32 %s8, 2
      // Predicated region
      $region37: #{tpu_custom_call.1} parent=35 // pred_check
        %p438 = pneg %p107
      $region38: #{tpu_custom_call.1} parent=35 // pred_check_branch
        %440 = sbr.rel (%p438) target = $region40
      $region39: #{tpu_custom_call.1} parent=35 // pred_region
        %p441 = scmp.lt.s32.totalorder %s19, 1
        %s442 = scalar_select %p441, %s19, 1
        %p443 = scmp.lt.s32.totalorder %s20, 0
        %s444 = scalar_select %p443, %s20, 0
        %s445 = sadd.s32 %s444, %s442
        %s446 = scalar_lea.vmem %s2, %s445
      $region40: #{tpu_custom_call.1} parent=35 // pred_fallthru
        _
    $region36: #{tpu_custom_call.1} parent=5 // pred_fallthru
      _
  $region6: #{tpu_custom_call.1} parent=0 // loop_footer
    %s12 = sadd.s32 1, %s8
  $region7: #{tpu_custom_call.1} parent=0 // loop_footer_branch
    %7 = sbr.rel target = $region3
  $region8: #{tpu_custom_call.1} parent=0 // loop_exit
    _

// kernel: tpu_custom_call.1
$region0: #{tpu_custom_call.1}
  #allocation0 [shape = 'u32[]', space=smem, size = 0x4, offset = 0x4, fixed_abs, tag = 'smem constant byte address 0x4 - core index']
  #allocation1 [shape = 'u32[72,128]{1,0:T(1,128)}', space=vmem, size = 0x9000, scoped, tag = 'internal scratch']
  %s0 = inlined_call_operand.vmem [shape: f32[512,4], index: 0, kind: input, shape index: {}]
  %s1 = inlined_call_operand.vmem [shape: bf16[512,4], index: 1, kind: input, shape index: {}]
  %s2 = inlined_call_operand.hbm [shape: f32[1,1,1], index: 2, kind: output, shape index: {}]
  %s3 = sld [smem:[#allocation0]]
  $region18: #{tpu_custom_call.1} parent=0
    _
  %s5 = ssub.s32 1, %s3
  %s6 = scalar_select 0, %s5, %s3
  $region1: #{tpu_custom_call.1} parent=0
    #allocation2 [shape = 'u8[512]{0}', space=vmem, size = 0x400, scoped, tag = 'output window, operand 0, single buffered']
    #allocation3 [shape = 's32[1]{0}', space=sflag, size = 0x4, scoped, tag = 'scoped memory for tpu_custom_call.1']
    %7 = vsyncpa [#allocation3], 0
    // Predicated region
    $region2: #{tpu_custom_call.1} parent=1 // pred_check
      _
    $region3: #{tpu_custom_call.1} parent=1 // pred_check_branch
      %9 = sbr.rel (0) target = $region5
    $region4: #{tpu_custom_call.1} parent=1 // pred_region
      _
    $region5: #{tpu_custom_call.1} parent=1 // pred_fallthru
      _
    // Predicated region
    $region6: #{tpu_custom_call.1} parent=1 // pred_check
      _
    $region7: #{tpu_custom_call.1} parent=1 // pred_check_branch
      %11 = sbr.rel (0) target = $region9
    $region8: #{tpu_custom_call.1} parent=1 // pred_region
      _
    $region9: #{tpu_custom_call.1} parent=1 // pred_fallthru
      _
    %v12 = vld [vmem:[%s0] sm:$0xff]
    %v13 = vld [vmem:[%s0 + $0x8] sm:$0xff]
    %v14 = vld [vmem:[%s0 + $0x10] sm:$0xff]
    %v15 = vld [vmem:[%s0 + $0x18] sm:$0xff]
    %v16 = vld [vmem:[%s0 + $0x20] sm:$0xff]
    %v17 = vld [vmem:[%s0 + $0x28] sm:$0xff]
    %v18 = vld [vmem:[%s0 + $0x30] sm:$0xff]
    %v19 = vld [vmem:[%s0 + $0x38] sm:$0xff]
    %v20 = vld [vmem:[%s0 + $0x40] sm:$0xff]
    %v21 = vld [vmem:[%s0 + $0x48] sm:$0xff]
    %v22 = vld [vmem:[%s0 + $0x50] sm:$0xff]
    %v23 = vld [vmem:[%s0 + $0x58] sm:$0xff]
    %v24 = vld [vmem:[%s0 + $0x60] sm:$0xff]
    %v25 = vld [vmem:[%s0 + $0x68] sm:$0xff]
    %v26 = vld [vmem:[%s0 + $0x70] sm:$0xff]
    %v27 = vld [vmem:[%s0 + $0x78] sm:$0xff]
    %v28 = vld [vmem:[%s0 + $0x80] sm:$0xff]
    %v29 = vld [vmem:[%s0 + $0x88] sm:$0xff]
    %v30 = vld [vmem:[%s0 + $0x90] sm:$0xff]
    %v31 = vld [vmem:[%s0 + $0x98] sm:$0xff]
    %v32 = vld [vmem:[%s0 + $0xa0] sm:$0xff]
    %v33 = vld [vmem:[%s0 + $0xa8] sm:$0xff]
    %v34 = vld [vmem:[%s0 + $0xb0] sm:$0xff]
    %v35 = vld [vmem:[%s0 + $0xb8] sm:$0xff]
    %v36 = vld [vmem:[%s0 + $0xc0] sm:$0xff]
    %v37 = vld [vmem:[%s0 + $0xc8] sm:$0xff]
    %v38 = vld [vmem:[%s0 + $0xd0] sm:$0xff]
    %v39 = vld [vmem:[%s0 + $0xd8] sm:$0xff]
    %v40 = vld [vmem:[%s0 + $0xe0] sm:$0xff]
    %v41 = vld [vmem:[%s0 + $0xe8] sm:$0xff]
    %v42 = vld [vmem:[%s0 + $0xf0] sm:$0xff]
    %v43 = vld [vmem:[%s0 + $0xf8] sm:$0xff]
    %v44 = vld [vmem:[%s0 + $0x100] sm:$0xff]
    %v45 = vld [vmem:[%s0 + $0x108] sm:$0xff]
    %v46 = vld [vmem:[%s0 + $0x110] sm:$0xff]
    %v47 = vld [vmem:[%s0 + $0x118] sm:$0xff]
    %v48 = vld [vmem:[%s0 + $0x120] sm:$0xff]
    %v49 = vld [vmem:[%s0 + $0x128] sm:$0xff]
    %v50 = vld [vmem:[%s0 + $0x130] sm:$0xff]
    %v51 = vld [vmem:[%s0 + $0x138] sm:$0xff]
    %v52 = vld [vmem:[%s0 + $0x140] sm:$0xff]
    %v53 = vld [vmem:[%s0 + $0x148] sm:$0xff]
    %v54 = vld [vmem:[%s0 + $0x150] sm:$0xff]
    %v55 = vld [vmem:[%s0 + $0x158] sm:$0xff]
    %v56 = vld [vmem:[%s0 + $0x160] sm:$0xff]
    %v57 = vld [vmem:[%s0 + $0x168] sm:$0xff]
    %v58 = vld [vmem:[%s0 + $0x170] sm:$0xff]
    %v59 = vld [vmem:[%s0 + $0x178] sm:$0xff]
    %v60 = vld [vmem:[%s0 + $0x180] sm:$0xff]
    %v61 = vld [vmem:[%s0 + $0x188] sm:$0xff]
    %v62 = vld [vmem:[%s0 + $0x190] sm:$0xff]
    %v63 = vld [vmem:[%s0 + $0x198] sm:$0xff]
    %v64 = vld [vmem:[%s0 + $0x1a0] sm:$0xff]
    %v65 = vld [vmem:[%s0 + $0x1a8] sm:$0xff]
    %v66 = vld [vmem:[%s0 + $0x1b0] sm:$0xff]
    %v67 = vld [vmem:[%s0 + $0x1b8] sm:$0xff]
    %v68 = vld [vmem:[%s0 + $0x1c0] sm:$0xff]
    %v69 = vld [vmem:[%s0 + $0x1c8] sm:$0xff]
    %v70 = vld [vmem:[%s0 + $0x1d0] sm:$0xff]
    %v71 = vld [vmem:[%s0 + $0x1d8] sm:$0xff]
    %v72 = vld [vmem:[%s0 + $0x1e0] sm:$0xff]
    %v73 = vld [vmem:[%s0 + $0x1e8] sm:$0xff]
    %v74 = vld [vmem:[%s0 + $0x1f0] sm:$0xff]
    %v75 = vld [vmem:[%s0 + $0x1f8] sm:$0xff]
    %v76 = vld [vmem:[%s1] sm:$0xf]
    %v77 = vld [vmem:[%s1 + $0x4] sm:$0xf]
    %v78 = vld [vmem:[%s1 + $0x8] sm:$0xf]
    %v79 = vld [vmem:[%s1 + $0xc] sm:$0xf]
    %v80 = vld [vmem:[%s1 + $0x10] sm:$0xf]
    %v81 = vld [vmem:[%s1 + $0x14] sm:$0xf]
    %v82 = vld [vmem:[%s1 + $0x18] sm:$0xf]
    %v83 = vld [vmem:[%s1 + $0x1c] sm:$0xf]
    %v84 = vld [vmem:[%s1 + $0x20] sm:$0xf]
    %v85 = vld [vmem:[%s1 + $0x24] sm:$0xf]
    %v86 = vld [vmem:[%s1 + $0x28] sm:$0xf]
    %v87 = vld [vmem:[%s1 + $0x2c] sm:$0xf]
    %v88 = vld [vmem:[%s1 + $0x30] sm:$0xf]
    %v89 = vld [vmem:[%s1 + $0x34] sm:$0xf]
    %v90 = vld [vmem:[%s1 + $0x38] sm:$0xf]
    %v91 = vld [vmem:[%s1 + $0x3c] sm:$0xf]
    %v92 = vld [vmem:[%s1 + $0x40] sm:$0xf]
    %v93 = vld [vmem:[%s1 + $0x44] sm:$0xf]
    %v94 = vld [vmem:[%s1 + $0x48] sm:$0xf]
    %v95 = vld [vmem:[%s1 + $0x4c] sm:$0xf]
    %v96 = vld [vmem:[%s1 + $0x50] sm:$0xf]
    %v97 = vld [vmem:[%s1 + $0x54] sm:$0xf]
    %v98 = vld [vmem:[%s1 + $0x58] sm:$0xf]
    %v99 = vld [vmem:[%s1 + $0x5c] sm:$0xf]
    %v100 = vld [vmem:[%s1 + $0x60] sm:$0xf]
    %v101 = vld [vmem:[%s1 + $0x64] sm:$0xf]
    %v102 = vld [vmem:[%s1 + $0x68] sm:$0xf]
    %v103 = vld [vmem:[%s1 + $0x6c] sm:$0xf]
    %v104 = vld [vmem:[%s1 + $0x70] sm:$0xf]
    %v105 = vld [vmem:[%s1 + $0x74] sm:$0xf]
    %v106 = vld [vmem:[%s1 + $0x78] sm:$0xf]
    %v107 = vld [vmem:[%s1 + $0x7c] sm:$0xf]
    %v108 = vld [vmem:[%s1 + $0x80] sm:$0xf]
    %v109 = vld [vmem:[%s1 + $0x84] sm:$0xf]
    %v110 = vld [vmem:[%s1 + $0x88] sm:$0xf]
    %v111 = vld [vmem:[%s1 + $0x8c] sm:$0xf]
    %v112 = vld [vmem:[%s1 + $0x90] sm:$0xf]
    %v113 = vld [vmem:[%s1 + $0x94] sm:$0xf]
    %v114 = vld [vmem:[%s1 + $0x98] sm:$0xf]
    %v115 = vld [vmem:[%s1 + $0x9c] sm:$0xf]
    %v116 = vld [vmem:[%s1 + $0xa0] sm:$0xf]
    %v117 = vld [vmem:[%s1 + $0xa4] sm:$0xf]
    %v118 = vld [vmem:[%s1 + $0xa8] sm:$0xf]
    %v119 = vld [vmem:[%s1 + $0xac] sm:$0xf]
    %v120 = vld [vmem:[%s1 + $0xb0] sm:$0xf]
    %v121 = vld [vmem:[%s1 + $0xb4] sm:$0xf]
    %v122 = vld [vmem:[%s1 + $0xb8] sm:$0xf]
    %v123 = vld [vmem:[%s1 + $0xbc] sm:$0xf]
    %v124 = vld [vmem:[%s1 + $0xc0] sm:$0xf]
    %v125 = vld [vmem:[%s1 + $0xc4] sm:$0xf]
    %v126 = vld [vmem:[%s1 + $0xc8] sm:$0xf]
    %v127 = vld [vmem:[%s1 + $0xcc] sm:$0xf]
    %v128 = vld [vmem:[%s1 + $0xd0] sm:$0xf]
    %v129 = vld [vmem:[%s1 + $0xd4] sm:$0xf]
    %v130 = vld [vmem:[%s1 + $0xd8] sm:$0xf]
    %v131 = vld [vmem:[%s1 + $0xdc] sm:$0xf]
    %v132 = vld [vmem:[%s1 + $0xe0] sm:$0xf]
    %v133 = vld [vmem:[%s1 + $0xe4] sm:$0xf]
    %v134 = vld [vmem:[%s1 + $0xe8] sm:$0xf]
    %v135 = vld [vmem:[%s1 + $0xec] sm:$0xf]
    %v136 = vld [vmem:[%s1 + $0xf0] sm:$0xf]
    %v137 = vld [vmem:[%s1 + $0xf4] sm:$0xf]
    %v138 = vld [vmem:[%s1 + $0xf8] sm:$0xf]
    %v139 = vld [vmem:[%s1 + $0xfc] sm:$0xf]
    %v140 = vunpack.c.l.bf16 %v76
    %v141 = vunpack.c.l.bf16 %v77
    %v142 = vunpack.c.l.bf16 %v78
    %v143 = vunpack.c.l.bf16 %v79
    %v144 = vunpack.c.l.bf16 %v80
    %v145 = vunpack.c.l.bf16 %v81
    %v146 = vunpack.c.l.bf16 %v82
    %v147 = vunpack.c.l.bf16 %v83
    %v148 = vunpack.c.l.bf16 %v84
    %v149 = vunpack.c.l.bf16 %v85
    %v150 = vunpack.c.l.bf16 %v86
    %v151 = vunpack.c.l.bf16 %v87
    %v152 = vunpack.c.l.bf16 %v88
    %v153 = vunpack.c.l.bf16 %v89
    %v154 = vunpack.c.l.bf16 %v90
    %v155 = vunpack.c.l.bf16 %v91
    %v156 = vunpack.c.l.bf16 %v92
    %v157 = vunpack.c.l.bf16 %v93
    %v158 = vunpack.c.l.bf16 %v94
    %v159 = vunpack.c.l.bf16 %v95
    %v160 = vunpack.c.l.bf16 %v96
    %v161 = vunpack.c.l.bf16 %v97
    %v162 = vunpack.c.l.bf16 %v98
    %v163 = vunpack.c.l.bf16 %v99
    %v164 = vunpack.c.l.bf16 %v100
    %v165 = vunpack.c.l.bf16 %v101
    %v166 = vunpack.c.l.bf16 %v102
    %v167 = vunpack.c.l.bf16 %v103
    %v168 = vunpack.c.l.bf16 %v104
    %v169 = vunpack.c.l.bf16 %v105
    %v170 = vunpack.c.l.bf16 %v106
    %v171 = vunpack.c.l.bf16 %v107
    %v172 = vunpack.c.l.bf16 %v108
    %v173 = vunpack.c.l.bf16 %v109
    %v174 = vunpack.c.l.bf16 %v110
    %v175 = vunpack.c.l.bf16 %v111
    %v176 = vunpack.c.l.bf16 %v112
    %v177 = vunpack.c.l.bf16 %v113
    %v178 = vunpack.c.l.bf16 %v114
    %v179 = vunpack.c.l.bf16 %v115
    %v180 = vunpack.c.l.bf16 %v116
    %v181 = vunpack.c.l.bf16 %v117
    %v182 = vunpack.c.l.bf16 %v118
    %v183 = vunpack.c.l.bf16 %v119
    %v184 = vunpack.c.l.bf16 %v120
    %v185 = vunpack.c.l.bf16 %v121
    %v186 = vunpack.c.l.bf16 %v122
    %v187 = vunpack.c.l.bf16 %v123
    %v188 = vunpack.c.l.bf16 %v124
    %v189 = vunpack.c.l.bf16 %v125
    %v190 = vunpack.c.l.bf16 %v126
    %v191 = vunpack.c.l.bf16 %v127
    %v192 = vunpack.c.l.bf16 %v128
    %v193 = vunpack.c.l.bf16 %v129
    %v194 = vunpack.c.l.bf16 %v130
    %v195 = vunpack.c.l.bf16 %v131
    %v196 = vunpack.c.l.bf16 %v132
    %v197 = vunpack.c.l.bf16 %v133
    %v198 = vunpack.c.l.bf16 %v134
    %v199 = vunpack.c.l.bf16 %v135
    %v200 = vunpack.c.l.bf16 %v136
    %v201 = vunpack.c.l.bf16 %v137
    %v202 = vunpack.c.l.bf16 %v138
    %v203 = vunpack.c.l.bf16 %v139
    %vm204 = vcmask 31744
    %v205 = vsel %vm204, %v12, -inf
    %206 = vmax.xlane.f32.xlu0 %v205
    %v207 = vpop.xlane.xlu0 %206
    %v208 = vsel %vm204, %v13, -inf
    %209 = vmax.xlane.f32.xlu0 %v208
    %v210 = vpop.xlane.xlu0 %209
    %v211 = vsel %vm204, %v14, -inf
    %212 = vmax.xlane.f32.xlu0 %v211
    %v213 = vpop.xlane.xlu0 %212
    %v214 = vsel %vm204, %v15, -inf
    %215 = vmax.xlane.f32.xlu0 %v214
    %v216 = vpop.xlane.xlu0 %215
    %v217 = vsel %vm204, %v16, -inf
    %218 = vmax.xlane.f32.xlu0 %v217
    %v219 = vpop.xlane.xlu0 %218
    %v220 = vsel %vm204, %v17, -inf
    %221 = vmax.xlane.f32.xlu0 %v220
    %v222 = vpop.xlane.xlu0 %221
    %v223 = vsel %vm204, %v18, -inf
    %224 = vmax.xlane.f32.xlu0 %v223
    %v225 = vpop.xlane.xlu0 %224
    %v226 = vsel %vm204, %v19, -inf
    %227 = vmax.xlane.f32.xlu0 %v226
    %v228 = vpop.xlane.xlu0 %227
    %v229 = vsel %vm204, %v20, -inf
    %230 = vmax.xlane.f32.xlu0 %v229
    %v231 = vpop.xlane.xlu0 %230
    %v232 = vsel %vm204, %v21, -inf
    %233 = vmax.xlane.f32.xlu0 %v232
    %v234 = vpop.xlane.xlu0 %233
    %v235 = vsel %vm204, %v22, -inf
    %236 = vmax.xlane.f32.xlu0 %v235
    %v237 = vpop.xlane.xlu0 %236
    %v238 = vsel %vm204, %v23, -inf
    %239 = vmax.xlane.f32.xlu0 %v238
    %v240 = vpop.xlane.xlu0 %239
    %v241 = vsel %vm204, %v24, -inf
    %242 = vmax.xlane.f32.xlu0 %v241
    %v243 = vpop.xlane.xlu0 %242
    %v244 = vsel %vm204, %v25, -inf
    %245 = vmax.xlane.f32.xlu0 %v244
    %v246 = vpop.xlane.xlu0 %245
    %v247 = vsel %vm204, %v26, -inf
    %248 = vmax.xlane.f32.xlu0 %v247
    %v249 = vpop.xlane.xlu0 %248
    %v250 = vsel %vm204, %v27, -inf
    %251 = vmax.xlane.f32.xlu0 %v250
    %v252 = vpop.xlane.xlu0 %251
    %v253 = vsel %vm204, %v28, -inf
    %254 = vmax.xlane.f32.xlu0 %v253
    %v255 = vpop.xlane.xlu0 %254
    %v256 = vsel %vm204, %v29, -inf
    %257 = vmax.xlane.f32.xlu0 %v256
    %v258 = vpop.xlane.xlu0 %257
    %v259 = vsel %vm204, %v30, -inf
    %260 = vmax.xlane.f32.xlu0 %v259
    %v261 = vpop.xlane.xlu0 %260
    %v262 = vsel %vm204, %v31, -inf
    %263 = vmax.xlane.f32.xlu0 %v262
    %v264 = vpop.xlane.xlu0 %263
    %v265 = vsel %vm204, %v32, -inf
    %266 = vmax.xlane.f32.xlu0 %v265
    %v267 = vpop.xlane.xlu0 %266
    %v268 = vsel %vm204, %v33, -inf
    %269 = vmax.xlane.f32.xlu0 %v268
    %v270 = vpop.xlane.xlu0 %269
    %v271 = vsel %vm204, %v34, -inf
    %272 = vmax.xlane.f32.xlu0 %v271
    %v273 = vpop.xlane.xlu0 %272
    %v274 = vsel %vm204, %v35, -inf
    %275 = vmax.xlane.f32.xlu0 %v274
    %v276 = vpop.xlane.xlu0 %275
    %v277 = vsel %vm204, %v36, -inf
    %278 = vmax.xlane.f32.xlu0 %v277
    %v279 = vpop.xlane.xlu0 %278
    %v280 = vsel %vm204, %v37, -inf
    %281 = vmax.xlane.f32.xlu0 %v280
    %v282 = vpop.xlane.xlu0 %281
    %v283 = vsel %vm204, %v38, -inf
    %284 = vmax.xlane.f32.xlu0 %v283
    %v285 = vpop.xlane.xlu0 %284
    %v286 = vsel %vm204, %v39, -inf
    %287 = vmax.xlane.f32.xlu0 %v286
    %v288 = vpop.xlane.xlu0 %287
    %v289 = vsel %vm204, %v40, -inf
    %290 = vmax.xlane.f32.xlu0 %v289
    %v291 = vpop.xlane.xlu0 %290
    %v292 = vsel %vm204, %v41, -inf
    %293 = vmax.xlane.f32.xlu0 %v292
    %v294 = vpop.xlane.xlu0 %293
    %v295 = vsel %vm204, %v42, -inf
    %296 = vmax.xlane.f32.xlu0 %v295
    %v297 = vpop.xlane.xlu0 %296
    %v298 = vsel %vm204, %v43, -inf
    %299 = vmax.xlane.f32.xlu0 %v298
    %v300 = vpop.xlane.xlu0 %299
    %v301 = vsel %vm204, %v44, -inf
    %302 = vmax.xlane.f32.xlu0 %v301
    %v303 = vpop.xlane.xlu0 %302
    %v304 = vsel %vm204, %v45, -inf
    %305 = vmax.xlane.f32.xlu0 %v304
    %v306 = vpop.xlane.xlu0 %305
    %v307 = vsel %vm204, %v46, -inf
    %308 = vmax.xlane.f32.xlu0 %v307
    %v309 = vpop.xlane.xlu0 %308
    %v310 = vsel %vm204, %v47, -inf
    %311 = vmax.xlane.f32.xlu0 %v310
    %v312 = vpop.xlane.xlu0 %311
    %v313 = vsel %vm204, %v48, -inf
    %314 = vmax.xlane.f32.xlu0 %v313
    %v315 = vpop.xlane.xlu0 %314
    %v316 = vsel %vm204, %v49, -inf
    %317 = vmax.xlane.f32.xlu0 %v316
    %v318 = vpop.xlane.xlu0 %317
    %v319 = vsel %vm204, %v50, -inf
    %320 = vmax.xlane.f32.xlu0 %v319
    %v321 = vpop.xlane.xlu0 %320
    %v322 = vsel %vm204, %v51, -inf
    %323 = vmax.xlane.f32.xlu0 %v322
    %v324 = vpop.xlane.xlu0 %323
    %v325 = vsel %vm204, %v52, -inf
    %326 = vmax.xlane.f32.xlu0 %v325
    %v327 = vpop.xlane.xlu0 %326
    %v328 = vsel %vm204, %v53, -inf
    %329 = vmax.xlane.f32.xlu0 %v328
    %v330 = vpop.xlane.xlu0 %329
    %v331 = vsel %vm204, %v54, -inf
    %332 = vmax.xlane.f32.xlu0 %v331
    %v333 = vpop.xlane.xlu0 %332
    %v334 = vsel %vm204, %v55, -inf
    %335 = vmax.xlane.f32.xlu0 %v334
    %v336 = vpop.xlane.xlu0 %335
    %v337 = vsel %vm204, %v56, -inf
    %338 = vmax.xlane.f32.xlu0 %v337
    %v339 = vpop.xlane.xlu0 %338
    %v340 = vsel %vm204, %v57, -inf
    %341 = vmax.xlane.f32.xlu0 %v340
    %v342 = vpop.xlane.xlu0 %341
    %v343 = vsel %vm204, %v58, -inf
    %344 = vmax.xlane.f32.xlu0 %v343
    %v345 = vpop.xlane.xlu0 %344
    %v346 = vsel %vm204, %v59, -inf
    %347 = vmax.xlane.f32.xlu0 %v346
    %v348 = vpop.xlane.xlu0 %347
    %v349 = vsel %vm204, %v60, -inf
    %350 = vmax.xlane.f32.xlu0 %v349
    %v351 = vpop.xlane.xlu0 %350
    %v352 = vsel %vm204, %v61, -inf
    %353 = vmax.xlane.f32.xlu0 %v352
    %v354 = vpop.xlane.xlu0 %353
    %v355 = vsel %vm204, %v62, -inf
    %356 = vmax.xlane.f32.xlu0 %v355
    %v357 = vpop.xlane.xlu0 %356
    %v358 = vsel %vm204, %v63, -inf
    %359 = vmax.xlane.f32.xlu0 %v358
    %v360 = vpop.xlane.xlu0 %359
    %v361 = vsel %vm204, %v64, -inf
    %362 = vmax.xlane.f32.xlu0 %v361
    %v363 = vpop.xlane.xlu0 %362
    %v364 = vsel %vm204, %v65, -inf
    %365 = vmax.xlane.f32.xlu0 %v364
    %v366 = vpop.xlane.xlu0 %365
    %v367 = vsel %vm204, %v66, -inf
    %368 = vmax.xlane.f32.xlu0 %v367
    %v369 = vpop.xlane.xlu0 %368
    %v370 = vsel %vm204, %v67, -inf
    %371 = vmax.xlane.f32.xlu0 %v370
    %v372 = vpop.xlane.xlu0 %371
    %v373 = vsel %vm204, %v68, -inf
    %374 = vmax.xlane.f32.xlu0 %v373
    %v375 = vpop.xlane.xlu0 %374
    %v376 = vsel %vm204, %v69, -inf
    %377 = vmax.xlane.f32.xlu0 %v376
    %v378 = vpop.xlane.xlu0 %377
    %v379 = vsel %vm204, %v70, -inf
    %380 = vmax.xlane.f32.xlu0 %v379
    %v381 = vpop.xlane.xlu0 %380
    %v382 = vsel %vm204, %v71, -inf
    %383 = vmax.xlane.f32.xlu0 %v382
    %v384 = vpop.xlane.xlu0 %383
    %v385 = vsel %vm204, %v72, -inf
    %386 = vmax.xlane.f32.xlu0 %v385
    %v387 = vpop.xlane.xlu0 %386
    %v388 = vsel %vm204, %v73, -inf
    %389 = vmax.xlane.f32.xlu0 %v388
    %v390 = vpop.xlane.xlu0 %389
    %v391 = vsel %vm204, %v74, -inf
    %392 = vmax.xlane.f32.xlu0 %v391
    %v393 = vpop.xlane.xlu0 %392
    %v394 = vsel %vm204, %v75, -inf
    %395 = vmax.xlane.f32.xlu0 %v394
    %v396 = vpop.xlane.xlu0 %395
    %v397 = vsub.f32 %v12, %v207
    %v398 = vsub.f32 %v13, %v210
    %v399 = vsub.f32 %v14, %v213
    %v400 = vsub.f32 %v15, %v216
    %v401 = vsub.f32 %v16, %v219
    %v402 = vsub.f32 %v17, %v222
    %v403 = vsub.f32 %v18, %v225
    %v404 = vsub.f32 %v19, %v228
    %v405 = vsub.f32 %v20, %v231
    %v406 = vsub.f32 %v21, %v234
    %v407 = vsub.f32 %v22, %v237
    %v408 = vsub.f32 %v23, %v240
    %v409 = vsub.f32 %v24, %v243
    %v410 = vsub.f32 %v25, %v246
    %v411 = vsub.f32 %v26, %v249
    %v412 = vsub.f32 %v27, %v252
    %v413 = vsub.f32 %v28, %v255
    %v414 = vsub.f32 %v29, %v258
    %v415 = vsub.f32 %v30, %v261
    %v416 = vsub.f32 %v31, %v264
    %v417 = vsub.f32 %v32, %v267
    %v418 = vsub.f32 %v33, %v270
    %v419 = vsub.f32 %v34, %v273
    %v420 = vsub.f32 %v35, %v276
    %v421 = vsub.f32 %v36, %v279
    %v422 = vsub.f32 %v37, %v282
    %v423 = vsub.f32 %v38, %v285
    %v424 = vsub.f32 %v39, %v288
    %v425 = vsub.f32 %v40, %v291
    %v426 = vsub.f32 %v41, %v294
    %v427 = vsub.f32 %v42, %v297
    %v428 = vsub.f32 %v43, %v300
    %v429 = vsub.f32 %v44, %v303
    %v430 = vsub.f32 %v45, %v306
    %v431 = vsub.f32 %v46, %v309
    %v432 = vsub.f32 %v47, %v312
    %v433 = vsub.f32 %v48, %v315
    %v434 = vsub.f32 %v49, %v318
    %v435 = vsub.f32 %v50, %v321
    %v436 = vsub.f32 %v51, %v324
    %v437 = vsub.f32 %v52, %v327
    %v438 = vsub.f32 %v53, %v330
    %v439 = vsub.f32 %v54, %v333
    %v440 = vsub.f32 %v55, %v336
    %v441 = vsub.f32 %v56, %v339
    %v442 = vsub.f32 %v57, %v342
    %v443 = vsub.f32 %v58, %v345
    %v444 = vsub.f32 %v59, %v348
    %v445 = vsub.f32 %v60, %v351
    %v446 = vsub.f32 %v61, %v354
    %v447 = vsub.f32 %v62, %v357
    %v448 = vsub.f32 %v63, %v360
    %v449 = vsub.f32 %v64, %v363
    %v450 = vsub.f32 %v65, %v366
    %v451 = vsub.f32 %v66, %v369
    %v452 = vsub.f32 %v67, %v372
    %v453 = vsub.f32 %v68, %v375
    %v454 = vsub.f32 %v69, %v378
    %v455 = vsub.f32 %v70, %v381
    %v456 = vsub.f32 %v71, %v384
    %v457 = vsub.f32 %v72, %v387
    %v458 = vsub.f32 %v73, %v390
    %v459 = vsub.f32 %v74, %v393
    %v460 = vsub.f32 %v75, %v396
    %v461 = vmul.f32 %v397, 1.442695
    %v462 = vpow.pop %v461
    %v463 = vmul.f32 %v398, 1.442695
    %v464 = vpow.pop %v463
    %v465 = vmul.f32 %v399, 1.442695
    %v466 = vpow.pop %v465
    %v467 = vmul.f32 %v400, 1.442695
    %v468 = vpow.pop %v467
    %v469 = vmul.f32 %v401, 1.442695
    %v470 = vpow.pop %v469
    %v471 = vmul.f32 %v402, 1.442695
    %v472 = vpow.pop %v471
    %v473 = vmul.f32 %v403, 1.442695
    %v474 = vpow.pop %v473
    %v475 = vmul.f32 %v404, 1.442695
    %v476 = vpow.pop %v475
    %v477 = vmul.f32 %v405, 1.442695
    %v478 = vpow.pop %v477
    %v479 = vmul.f32 %v406, 1.442695
    %v480 = vpow.pop %v479
    %v481 = vmul.f32 %v407, 1.442695
    %v482 = vpow.pop %v481
    %v483 = vmul.f32 %v408, 1.442695
    %v484 = vpow.pop %v483
    %v485 = vmul.f32 %v409, 1.442695
    %v486 = vpow.pop %v485
    %v487 = vmul.f32 %v410, 1.442695
    %v488 = vpow.pop %v487
    %v489 = vmul.f32 %v411, 1.442695
    %v490 = vpow.pop %v489
    %v491 = vmul.f32 %v412, 1.442695
    %v492 = vpow.pop %v491
    %v493 = vmul.f32 %v413, 1.442695
    %v494 = vpow.pop %v493
    %v495 = vmul.f32 %v414, 1.442695
    %v496 = vpow.pop %v495
    %v497 = vmul.f32 %v415, 1.442695
    %v498 = vpow.pop %v497
    %v499 = vmul.f32 %v416, 1.442695
    %v500 = vpow.pop %v499
    %v501 = vmul.f32 %v417, 1.442695
    %v502 = vpow.pop %v501
    %v503 = vmul.f32 %v418, 1.442695
    %v504 = vpow.pop %v503
    %v505 = vmul.f32 %v419, 1.442695
    %v506 = vpow.pop %v505
    %v507 = vmul.f32 %v420, 1.442695
    %v508 = vpow.pop %v507
    %v509 = vmul.f32 %v421, 1.442695
    %v510 = vpow.pop %v509
    %v511 = vmul.f32 %v422, 1.442695
    %v512 = vpow.pop %v511
    %v513 = vmul.f32 %v423, 1.442695
    %v514 = vpow.pop %v513
    %v515 = vmul.f32 %v424, 1.442695
    %v516 = vpow.pop %v515
    %v517 = vmul.f32 %v425, 1.442695
    %v518 = vpow.pop %v517
    %v519 = vmul.f32 %v426, 1.442695
    %v520 = vpow.pop %v519
    %v521 = vmul.f32 %v427, 1.442695
    %v522 = vpow.pop %v521
    %v523 = vmul.f32 %v428, 1.442695
    %v524 = vpow.pop %v523
    %v525 = vmul.f32 %v429, 1.442695
    %v526 = vpow.pop %v525
    %v527 = vmul.f32 %v430, 1.442695
    %v528 = vpow.pop %v527
    %v529 = vmul.f32 %v431, 1.442695
    %v530 = vpow.pop %v529
    %v531 = vmul.f32 %v432, 1.442695
    %v532 = vpow.pop %v531
    %v533 = vmul.f32 %v433, 1.442695
    %v534 = vpow.pop %v533
    %v535 = vmul.f32 %v434, 1.442695
    %v536 = vpow.pop %v535
    %v537 = vmul.f32 %v435, 1.442695
    %v538 = vpow.pop %v537
    %v539 = vmul.f32 %v436, 1.442695
    %v540 = vpow.pop %v539
    %v541 = vmul.f32 %v437, 1.442695
    %v542 = vpow.pop %v541
    %v543 = vmul.f32 %v438, 1.442695
    %v544 = vpow.pop %v543
    %v545 = vmul.f32 %v439, 1.442695
    %v546 = vpow.pop %v545
    %v547 = vmul.f32 %v440, 1.442695
    %v548 = vpow.pop %v547
    %v549 = vmul.f32 %v441, 1.442695
    %v550 = vpow.pop %v549
    %v551 = vmul.f32 %v442, 1.442695
    %v552 = vpow.pop %v551
    %v553 = vmul.f32 %v443, 1.442695
    %v554 = vpow.pop %v553
    %v555 = vmul.f32 %v444, 1.442695
    %v556 = vpow.pop %v555
    %v557 = vmul.f32 %v445, 1.442695
    %v558 = vpow.pop %v557
    %v559 = vmul.f32 %v446, 1.442695
    %v560 = vpow.pop %v559
    %v561 = vmul.f32 %v447, 1.442695
    %v562 = vpow.pop %v561
    %v563 = vmul.f32 %v448, 1.442695
    %v564 = vpow.pop %v563
    %v565 = vmul.f32 %v449, 1.442695
    %v566 = vpow.pop %v565
    %v567 = vmul.f32 %v450, 1.442695
    %v568 = vpow.pop %v567
    %v569 = vmul.f32 %v451, 1.442695
    %v570 = vpow.pop %v569
    %v571 = vmul.f32 %v452, 1.442695
    %v572 = vpow.pop %v571
    %v573 = vmul.f32 %v453, 1.442695
    %v574 = vpow.pop %v573
    %v575 = vmul.f32 %v454, 1.442695
    %v576 = vpow.pop %v575
    %v577 = vmul.f32 %v455, 1.442695
    %v578 = vpow.pop %v577
    %v579 = vmul.f32 %v456, 1.442695
    %v580 = vpow.pop %v579
    %v581 = vmul.f32 %v457, 1.442695
    %v582 = vpow.pop %v581
    %v583 = vmul.f32 %v458, 1.442695
    %v584 = vpow.pop %v583
    %v585 = vmul.f32 %v459, 1.442695
    %v586 = vpow.pop %v585
    %v587 = vmul.f32 %v460, 1.442695
    %v588 = vpow.pop %v587
    %v589 = vsel %vm204, %v462, 0.0
    %590 = vadd.xlane.f32.xlu0 %v589
    %v591 = vpop.xlane.xlu0 %590
    %v592 = vsel %vm204, %v464, 0.0
    %593 = vadd.xlane.f32.xlu0 %v592
    %v594 = vpop.xlane.xlu0 %593
    %v595 = vsel %vm204, %v466, 0.0
    %596 = vadd.xlane.f32.xlu0 %v595
    %v597 = vpop.xlane.xlu0 %596
    %v598 = vsel %vm204, %v468, 0.0
    %599 = vadd.xlane.f32.xlu0 %v598
    %v600 = vpop.xlane.xlu0 %599
    %v601 = vsel %vm204, %v470, 0.0
    %602 = vadd.xlane.f32.xlu0 %v601
    %v603 = vpop.xlane.xlu0 %602
    %v604 = vsel %vm204, %v472, 0.0
    %605 = vadd.xlane.f32.xlu0 %v604
    %v606 = vpop.xlane.xlu0 %605
    %v607 = vsel %vm204, %v474, 0.0
    %608 = vadd.xlane.f32.xlu0 %v607
    %v609 = vpop.xlane.xlu0 %608
    %v610 = vsel %vm204, %v476, 0.0
    %611 = vadd.xlane.f32.xlu0 %v610
    %v612 = vpop.xlane.xlu0 %611
    %v613 = vsel %vm204, %v478, 0.0
    %614 = vadd.xlane.f32.xlu0 %v613
    %v615 = vpop.xlane.xlu0 %614
    %v616 = vsel %vm204, %v480, 0.0
    %617 = vadd.xlane.f32.xlu0 %v616
    %v618 = vpop.xlane.xlu0 %617
    %v619 = vsel %vm204, %v482, 0.0
    %620 = vadd.xlane.f32.xlu0 %v619
    %v621 = vpop.xlane.xlu0 %620
    %v622 = vsel %vm204, %v484, 0.0
    %623 = vadd.xlane.f32.xlu0 %v622
    %v624 = vpop.xlane.xlu0 %623
    %v625 = vsel %vm204, %v486, 0.0
    %626 = vadd.xlane.f32.xlu0 %v625
    %v627 = vpop.xlane.xlu0 %626
    %v628 = vsel %vm204, %v488, 0.0
    %629 = vadd.xlane.f32.xlu0 %v628
    %v630 = vpop.xlane.xlu0 %629
    %v631 = vsel %vm204, %v490, 0.0
    %632 = vadd.xlane.f32.xlu0 %v631
    %v633 = vpop.xlane.xlu0 %632
    %v634 = vsel %vm204, %v492, 0.0
    %635 = vadd.xlane.f32.xlu0 %v634
    %v636 = vpop.xlane.xlu0 %635
    %v637 = vsel %vm204, %v494, 0.0
    %638 = vadd.xlane.f32.xlu0 %v637
    %v639 = vpop.xlane.xlu0 %638
    %v640 = vsel %vm204, %v496, 0.0
    %641 = vadd.xlane.f32.xlu0 %v640
    %v642 = vpop.xlane.xlu0 %641
    %v643 = vsel %vm204, %v498, 0.0
    %644 = vadd.xlane.f32.xlu0 %v643
    %v645 = vpop.xlane.xlu0 %644
    %v646 = vsel %vm204, %v500, 0.0
    %647 = vadd.xlane.f32.xlu0 %v646
    %v648 = vpop.xlane.xlu0 %647
    %v649 = vsel %vm204, %v502, 0.0
    %650 = vadd.xlane.f32.xlu0 %v649
    %v651 = vpop.xlane.xlu0 %650
    %v652 = vsel %vm204, %v504, 0.0
    %653 = vadd.xlane.f32.xlu0 %v652
    %v654 = vpop.xlane.xlu0 %653
    %v655 = vsel %vm204, %v506, 0.0
    %656 = vadd.xlane.f32.xlu0 %v655
    %v657 = vpop.xlane.xlu0 %656
    %v658 = vsel %vm204, %v508, 0.0
    %659 = vadd.xlane.f32.xlu0 %v658
    %v660 = vpop.xlane.xlu0 %659
    %v661 = vsel %vm204, %v510, 0.0
    %662 = vadd.xlane.f32.xlu0 %v661
    %v663 = vpop.xlane.xlu0 %662
    %v664 = vsel %vm204, %v512, 0.0
    %665 = vadd.xlane.f32.xlu0 %v664
    %v666 = vpop.xlane.xlu0 %665
    %v667 = vsel %vm204, %v514, 0.0
    %668 = vadd.xlane.f32.xlu0 %v667
    %v669 = vpop.xlane.xlu0 %668
    %v670 = vsel %vm204, %v516, 0.0
    %671 = vadd.xlane.f32.xlu0 %v670
    %v672 = vpop.xlane.xlu0 %671
    %v673 = vsel %vm204, %v518, 0.0
    %674 = vadd.xlane.f32.xlu0 %v673
    %v675 = vpop.xlane.xlu0 %674
    %v676 = vsel %vm204, %v520, 0.0
    %677 = vadd.xlane.f32.xlu0 %v676
    %v678 = vpop.xlane.xlu0 %677
    %v679 = vsel %vm204, %v522, 0.0
    %680 = vadd.xlane.f32.xlu0 %v679
    %v681 = vpop.xlane.xlu0 %680
    %v682 = vsel %vm204, %v524, 0.0
    %683 = vadd.xlane.f32.xlu0 %v682
    %v684 = vpop.xlane.xlu0 %683
    %v685 = vsel %vm204, %v526, 0.0
    %686 = vadd.xlane.f32.xlu0 %v685
    %v687 = vpop.xlane.xlu0 %686
    %v688 = vsel %vm204, %v528, 0.0
    %689 = vadd.xlane.f32.xlu0 %v688
    %v690 = vpop.xlane.xlu0 %689
    %v691 = vsel %vm204, %v530, 0.0
    %692 = vadd.xlane.f32.xlu0 %v691
    %v693 = vpop.xlane.xlu0 %692
    %v694 = vsel %vm204, %v532, 0.0
    %695 = vadd.xlane.f32.xlu0 %v694
    %v696 = vpop.xlane.xlu0 %695
    %v697 = vsel %vm204, %v534, 0.0
    %698 = vadd.xlane.f32.xlu0 %v697
    %v699 = vpop.xlane.xlu0 %698
    %v700 = vsel %vm204, %v536, 0.0
    %701 = vadd.xlane.f32.xlu0 %v700
    %v702 = vpop.xlane.xlu0 %701
    %v703 = vsel %vm204, %v538, 0.0
    %704 = vadd.xlane.f32.xlu0 %v703
    %v705 = vpop.xlane.xlu0 %704
    %v706 = vsel %vm204, %v540, 0.0
    %707 = vadd.xlane.f32.xlu0 %v706
    %v708 = vpop.xlane.xlu0 %707
    %v709 = vsel %vm204, %v542, 0.0
    %710 = vadd.xlane.f32.xlu0 %v709
    %v711 = vpop.xlane.xlu0 %710
    %v712 = vsel %vm204, %v544, 0.0
    %713 = vadd.xlane.f32.xlu0 %v712
    %v714 = vpop.xlane.xlu0 %713
    %v715 = vsel %vm204, %v546, 0.0
    %716 = vadd.xlane.f32.xlu0 %v715
    %v717 = vpop.xlane.xlu0 %716
    %v718 = vsel %vm204, %v548, 0.0
    %719 = vadd.xlane.f32.xlu0 %v718
    %v720 = vpop.xlane.xlu0 %719
    %v721 = vsel %vm204, %v550, 0.0
    %722 = vadd.xlane.f32.xlu0 %v721
    %v723 = vpop.xlane.xlu0 %722
    %v724 = vsel %vm204, %v552, 0.0
    %725 = vadd.xlane.f32.xlu0 %v724
    %v726 = vpop.xlane.xlu0 %725
    %v727 = vsel %vm204, %v554, 0.0
    %728 = vadd.xlane.f32.xlu0 %v727
    %v729 = vpop.xlane.xlu0 %728
    %v730 = vsel %vm204, %v556, 0.0
    %731 = vadd.xlane.f32.xlu0 %v730
    %v732 = vpop.xlane.xlu0 %731
    %v733 = vsel %vm204, %v558, 0.0
    %734 = vadd.xlane.f32.xlu0 %v733
    %v735 = vpop.xlane.xlu0 %734
    %v736 = vsel %vm204, %v560, 0.0
    %737 = vadd.xlane.f32.xlu0 %v736
    %v738 = vpop.xlane.xlu0 %737
    %v739 = vsel %vm204, %v562, 0.0
    %740 = vadd.xlane.f32.xlu0 %v739
    %v741 = vpop.xlane.xlu0 %740
    %v742 = vsel %vm204, %v564, 0.0
    %743 = vadd.xlane.f32.xlu0 %v742
    %v744 = vpop.xlane.xlu0 %743
    %v745 = vsel %vm204, %v566, 0.0
    %746 = vadd.xlane.f32.xlu0 %v745
    %v747 = vpop.xlane.xlu0 %746
    %v748 = vsel %vm204, %v568, 0.0
    %749 = vadd.xlane.f32.xlu0 %v748
    %v750 = vpop.xlane.xlu0 %749
    %v751 = vsel %vm204, %v570, 0.0
    %752 = vadd.xlane.f32.xlu0 %v751
    %v753 = vpop.xlane.xlu0 %752
    %v754 = vsel %vm204, %v572, 0.0
    %755 = vadd.xlane.f32.xlu0 %v754
    %v756 = vpop.xlane.xlu0 %755
    %v757 = vsel %vm204, %v574, 0.0
    %758 = vadd.xlane.f32.xlu0 %v757
    %v759 = vpop.xlane.xlu0 %758
    %v760 = vsel %vm204, %v576, 0.0
    %761 = vadd.xlane.f32.xlu0 %v760
    %v762 = vpop.xlane.xlu0 %761
    %v763 = vsel %vm204, %v578, 0.0
    %764 = vadd.xlane.f32.xlu0 %v763
    %v765 = vpop.xlane.xlu0 %764
    %v766 = vsel %vm204, %v580, 0.0
    %767 = vadd.xlane.f32.xlu0 %v766
    %v768 = vpop.xlane.xlu0 %767
    %v769 = vsel %vm204, %v582, 0.0
    %770 = vadd.xlane.f32.xlu0 %v769
    %v771 = vpop.xlane.xlu0 %770
    %v772 = vsel %vm204, %v584, 0.0
    %773 = vadd.xlane.f32.xlu0 %v772
    %v774 = vpop.xlane.xlu0 %773
    %v775 = vsel %vm204, %v586, 0.0
    %776 = vadd.xlane.f32.xlu0 %v775
    %v777 = vpop.xlane.xlu0 %776
    %v778 = vsel %vm204, %v588, 0.0
    %779 = vadd.xlane.f32.xlu0 %v778
    %v780 = vpop.xlane.xlu0 %779
    %v781 = vlog2.pop %v591
    %v782 = vmul.f32 %v781, 0.6931472
    %v783 = vlog2.pop %v594
    %v784 = vmul.f32 %v783, 0.6931472
    %v785 = vlog2.pop %v597
    %v786 = vmul.f32 %v785, 0.6931472
    %v787 = vlog2.pop %v600
    %v788 = vmul.f32 %v787, 0.6931472
    %v789 = vlog2.pop %v603
    %v790 = vmul.f32 %v789, 0.6931472
    %v791 = vlog2.pop %v606
    %v792 = vmul.f32 %v791, 0.6931472
    %v793 = vlog2.pop %v609
    %v794 = vmul.f32 %v793, 0.6931472
    %v795 = vlog2.pop %v612
    %v796 = vmul.f32 %v795, 0.6931472
    %v797 = vlog2.pop %v615
    %v798 = vmul.f32 %v797, 0.6931472
    %v799 = vlog2.pop %v618
    %v800 = vmul.f32 %v799, 0.6931472
    %v801 = vlog2.pop %v621
    %v802 = vmul.f32 %v801, 0.6931472
    %v803 = vlog2.pop %v624
    %v804 = vmul.f32 %v803, 0.6931472
    %v805 = vlog2.pop %v627
    %v806 = vmul.f32 %v805, 0.6931472
    %v807 = vlog2.pop %v630
    %v808 = vmul.f32 %v807, 0.6931472
    %v809 = vlog2.pop %v633
    %v810 = vmul.f32 %v809, 0.6931472
    %v811 = vlog2.pop %v636
    %v812 = vmul.f32 %v811, 0.6931472
    %v813 = vlog2.pop %v639
    %v814 = vmul.f32 %v813, 0.6931472
    %v815 = vlog2.pop %v642
    %v816 = vmul.f32 %v815, 0.6931472
    %v817 = vlog2.pop %v645
    %v818 = vmul.f32 %v817, 0.6931472
    %v819 = vlog2.pop %v648
    %v820 = vmul.f32 %v819, 0.6931472
    %v821 = vlog2.pop %v651
    %v822 = vmul.f32 %v821, 0.6931472
    %v823 = vlog2.pop %v654
    %v824 = vmul.f32 %v823, 0.6931472
    %v825 = vlog2.pop %v657
    %v826 = vmul.f32 %v825, 0.6931472
    %v827 = vlog2.pop %v660
    %v828 = vmul.f32 %v827, 0.6931472
    %v829 = vlog2.pop %v663
    %v830 = vmul.f32 %v829, 0.6931472
    %v831 = vlog2.pop %v666
    %v832 = vmul.f32 %v831, 0.6931472
    %v833 = vlog2.pop %v669
    %v834 = vmul.f32 %v833, 0.6931472
    %v835 = vlog2.pop %v672
    %v836 = vmul.f32 %v835, 0.6931472
    %v837 = vlog2.pop %v675
    %v838 = vmul.f32 %v837, 0.6931472
    %v839 = vlog2.pop %v678
    %v840 = vmul.f32 %v839, 0.6931472
    %v841 = vlog2.pop %v681
    %v842 = vmul.f32 %v841, 0.6931472
    %v843 = vlog2.pop %v684
    %v844 = vmul.f32 %v843, 0.6931472
    %v845 = vlog2.pop %v687
    %v846 = vmul.f32 %v845, 0.6931472
    %v847 = vlog2.pop %v690
    %v848 = vmul.f32 %v847, 0.6931472
    %v849 = vlog2.pop %v693
    %v850 = vmul.f32 %v849, 0.6931472
    %v851 = vlog2.pop %v696
    %v852 = vmul.f32 %v851, 0.6931472
    %v853 = vlog2.pop %v699
    %v854 = vmul.f32 %v853, 0.6931472
    %v855 = vlog2.pop %v702
    %v856 = vmul.f32 %v855, 0.6931472
    %v857 = vlog2.pop %v705
    %v858 = vmul.f32 %v857, 0.6931472
    %v859 = vlog2.pop %v708
    %v860 = vmul.f32 %v859, 0.6931472
    %v861 = vlog2.pop %v711
    %v862 = vmul.f32 %v861, 0.6931472
    %v863 = vlog2.pop %v714
    %v864 = vmul.f32 %v863, 0.6931472
    %v865 = vlog2.pop %v717
    %v866 = vmul.f32 %v865, 0.6931472
    %v867 = vlog2.pop %v720
    %v868 = vmul.f32 %v867, 0.6931472
    %v869 = vlog2.pop %v723
    %v870 = vmul.f32 %v869, 0.6931472
    %v871 = vlog2.pop %v726
    %v872 = vmul.f32 %v871, 0.6931472
    %v873 = vlog2.pop %v729
    %v874 = vmul.f32 %v873, 0.6931472
    %v875 = vlog2.pop %v732
    %v876 = vmul.f32 %v875, 0.6931472
    %v877 = vlog2.pop %v735
    %v878 = vmul.f32 %v877, 0.6931472
    %v879 = vlog2.pop %v738
    %v880 = vmul.f32 %v879, 0.6931472
    %v881 = vlog2.pop %v741
    %v882 = vmul.f32 %v881, 0.6931472
    %v883 = vlog2.pop %v744
    %v884 = vmul.f32 %v883, 0.6931472
    %v885 = vlog2.pop %v747
    %v886 = vmul.f32 %v885, 0.6931472
    %v887 = vlog2.pop %v750
    %v888 = vmul.f32 %v887, 0.6931472
    %v889 = vlog2.pop %v753
    %v890 = vmul.f32 %v889, 0.6931472
    %v891 = vlog2.pop %v756
    %v892 = vmul.f32 %v891, 0.6931472
    %v893 = vlog2.pop %v759
    %v894 = vmul.f32 %v893, 0.6931472
    %v895 = vlog2.pop %v762
    %v896 = vmul.f32 %v895, 0.6931472
    %v897 = vlog2.pop %v765
    %v898 = vmul.f32 %v897, 0.6931472
    %v899 = vlog2.pop %v768
    %v900 = vmul.f32 %v899, 0.6931472
    %v901 = vlog2.pop %v771
    %v902 = vmul.f32 %v901, 0.6931472
    %v903 = vlog2.pop %v774
    %v904 = vmul.f32 %v903, 0.6931472
    %v905 = vlog2.pop %v777
    %v906 = vmul.f32 %v905, 0.6931472
    %v907 = vlog2.pop %v780
    %v908 = vmul.f32 %v907, 0.6931472
    %v909 = vsub.f32 %v397, %v782
    %v910 = vsub.f32 %v398, %v784
    %v911 = vsub.f32 %v399, %v786
    %v912 = vsub.f32 %v400, %v788
    %v913 = vsub.f32 %v401, %v790
    %v914 = vsub.f32 %v402, %v792
    %v915 = vsub.f32 %v403, %v794
    %v916 = vsub.f32 %v404, %v796
    %v917 = vsub.f32 %v405, %v798
    %v918 = vsub.f32 %v406, %v800
    %v919 = vsub.f32 %v407, %v802
    %v920 = vsub.f32 %v408, %v804
    %v921 = vsub.f32 %v409, %v806
    %v922 = vsub.f32 %v410, %v808
    %v923 = vsub.f32 %v411, %v810
    %v924 = vsub.f32 %v412, %v812
    %v925 = vsub.f32 %v413, %v814
    %v926 = vsub.f32 %v414, %v816
    %v927 = vsub.f32 %v415, %v818
    %v928 = vsub.f32 %v416, %v820
    %v929 = vsub.f32 %v417, %v822
    %v930 = vsub.f32 %v418, %v824
    %v931 = vsub.f32 %v419, %v826
    %v932 = vsub.f32 %v420, %v828
    %v933 = vsub.f32 %v421, %v830
    %v934 = vsub.f32 %v422, %v832
    %v935 = vsub.f32 %v423, %v834
    %v936 = vsub.f32 %v424, %v836
    %v937 = vsub.f32 %v425, %v838
    %v938 = vsub.f32 %v426, %v840
    %v939 = vsub.f32 %v427, %v842
    %v940 = vsub.f32 %v428, %v844
    %v941 = vsub.f32 %v429, %v846
    %v942 = vsub.f32 %v430, %v848
    %v943 = vsub.f32 %v431, %v850
    %v944 = vsub.f32 %v432, %v852
    %v945 = vsub.f32 %v433, %v854
    %v946 = vsub.f32 %v434, %v856
    %v947 = vsub.f32 %v435, %v858
    %v948 = vsub.f32 %v436, %v860
    %v949 = vsub.f32 %v437, %v862
    %v950 = vsub.f32 %v438, %v864
    %v951 = vsub.f32 %v439, %v866
    %v952 = vsub.f32 %v440, %v868
    %v953 = vsub.f32 %v441, %v870
    %v954 = vsub.f32 %v442, %v872
    %v955 = vsub.f32 %v443, %v874
    %v956 = vsub.f32 %v444, %v876
    %v957 = vsub.f32 %v445, %v878
    %v958 = vsub.f32 %v446, %v880
    %v959 = vsub.f32 %v447, %v882
    %v960 = vsub.f32 %v448, %v884
    %v961 = vsub.f32 %v449, %v886
    %v962 = vsub.f32 %v450, %v888
    %v963 = vsub.f32 %v451, %v890
    %v964 = vsub.f32 %v452, %v892
    %v965 = vsub.f32 %v453, %v894
    %v966 = vsub.f32 %v454, %v896
    %v967 = vsub.f32 %v455, %v898
    %v968 = vsub.f32 %v456, %v900
    %v969 = vsub.f32 %v457, %v902
    %v970 = vsub.f32 %v458, %v904
    %v971 = vsub.f32 %v459, %v906
    %v972 = vsub.f32 %v460, %v908
    %v973 = vmul.f32 %v140, %v909
    %v974 = vmul.f32 %v141, %v910
    %v975 = vmul.f32 %v142, %v911
    %v976 = vmul.f32 %v143, %v912
    %v977 = vmul.f32 %v144, %v913
    %v978 = vmul.f32 %v145, %v914
    %v979 = vmul.f32 %v146, %v915
    %v980 = vmul.f32 %v147, %v916
    %v981 = vmul.f32 %v148, %v917
    %v982 = vmul.f32 %v149, %v918
    %v983 = vmul.f32 %v150, %v919
    %v984 = vmul.f32 %v151, %v920
    %v985 = vmul.f32 %v152, %v921
    %v986 = vmul.f32 %v153, %v922
    %v987 = vmul.f32 %v154, %v923
    %v988 = vmul.f32 %v155, %v924
    %v989 = vmul.f32 %v156, %v925
    %v990 = vmul.f32 %v157, %v926
    %v991 = vmul.f32 %v158, %v927
    %v992 = vmul.f32 %v159, %v928
    %v993 = vmul.f32 %v160, %v929
    %v994 = vmul.f32 %v161, %v930
    %v995 = vmul.f32 %v162, %v931
    %v996 = vmul.f32 %v163, %v932
    %v997 = vmul.f32 %v164, %v933
    %v998 = vmul.f32 %v165, %v934
    %v999 = vmul.f32 %v166, %v935
    %v1000 = vmul.f32 %v167, %v936
    %v1001 = vmul.f32 %v168, %v937
    %v1002 = vmul.f32 %v169, %v938
    %v1003 = vmul.f32 %v170, %v939
    %v1004 = vmul.f32 %v171, %v940
    %v1005 = vmul.f32 %v172, %v941
    %v1006 = vmul.f32 %v173, %v942
    %v1007 = vmul.f32 %v174, %v943
    %v1008 = vmul.f32 %v175, %v944
    %v1009 = vmul.f32 %v176, %v945
    %v1010 = vmul.f32 %v177, %v946
    %v1011 = vmul.f32 %v178, %v947
    %v1012 = vmul.f32 %v179, %v948
    %v1013 = vmul.f32 %v180, %v949
    %v1014 = vmul.f32 %v181, %v950
    %v1015 = vmul.f32 %v182, %v951
    %v1016 = vmul.f32 %v183, %v952
    %v1017 = vmul.f32 %v184, %v953
    %v1018 = vmul.f32 %v185, %v954
    %v1019 = vmul.f32 %v186, %v955
    %v1020 = vmul.f32 %v187, %v956
    %v1021 = vmul.f32 %v188, %v957
    %v1022 = vmul.f32 %v189, %v958
    %v1023 = vmul.f32 %v190, %v959
    %v1024 = vmul.f32 %v191, %v960
    %v1025 = vmul.f32 %v192, %v961
    %v1026 = vmul.f32 %v193, %v962
    %v1027 = vmul.f32 %v194, %v963
    %v1028 = vmul.f32 %v195, %v964
    %v1029 = vmul.f32 %v196, %v965
    %v1030 = vmul.f32 %v197, %v966
    %v1031 = vmul.f32 %v198, %v967
    %v1032 = vmul.f32 %v199, %v968
    %v1033 = vmul.f32 %v200, %v969
    %v1034 = vmul.f32 %v201, %v970
    %v1035 = vmul.f32 %v202, %v971
    %v1036 = vmul.f32 %v203, %v972
    %v1037 = vsel %vm204, %v973, 0.0
    %v1038 = vsel %vm204, %v974, 0.0
    %v1039 = vadd.f32 %v1037, %v1038
    %v1040 = vsel %vm204, %v975, 0.0
    %v1041 = vadd.f32 %v1039, %v1040
    %v1042 = vsel %vm204, %v976, 0.0
    %v1043 = vadd.f32 %v1041, %v1042
    %v1044 = vsel %vm204, %v977, 0.0
    %v1045 = vadd.f32 %v1043, %v1044
    %v1046 = vsel %vm204, %v978, 0.0
    %v1047 = vadd.f32 %v1045, %v1046
    %v1048 = vsel %vm204, %v979, 0.0
    %v1049 = vadd.f32 %v1047, %v1048
    %v1050 = vsel %vm204, %v980, 0.0
    %v1051 = vadd.f32 %v1049, %v1050
    %v1052 = vsel %vm204, %v981, 0.0
    %v1053 = vadd.f32 %v1051, %v1052
    %v1054 = vsel %vm204, %v982, 0.0
    %v1055 = vadd.f32 %v1053, %v1054
    %v1056 = vsel %vm204, %v983, 0.0
    %v1057 = vadd.f32 %v1055, %v1056
    %v1058 = vsel %vm204, %v984, 0.0
    %v1059 = vadd.f32 %v1057, %v1058
    %v1060 = vsel %vm204, %v985, 0.0
    %v1061 = vadd.f32 %v1059, %v1060
    %v1062 = vsel %vm204, %v986, 0.0
    %v1063 = vadd.f32 %v1061, %v1062
    %v1064 = vsel %vm204, %v987, 0.0
    %v1065 = vadd.f32 %v1063, %v1064
    %v1066 = vsel %vm204, %v988, 0.0
    %v1067 = vadd.f32 %v1065, %v1066
    %v1068 = vsel %vm204, %v989, 0.0
    %v1069 = vadd.f32 %v1067, %v1068
    %v1070 = vsel %vm204, %v990, 0.0
    %v1071 = vadd.f32 %v1069, %v1070
    %v1072 = vsel %vm204, %v991, 0.0
    %v1073 = vadd.f32 %v1071, %v1072
    %v1074 = vsel %vm204, %v992, 0.0
    %v1075 = vadd.f32 %v1073, %v1074
    %v1076 = vsel %vm204, %v993, 0.0
    %v1077 = vadd.f32 %v1075, %v1076
    %v1078 = vsel %vm204, %v994, 0.0
    %v1079 = vadd.f32 %v1077, %v1078
    %v1080 = vsel %vm204, %v995, 0.0
    %v1081 = vadd.f32 %v1079, %v1080
    %v1082 = vsel %vm204, %v996, 0.0
    %v1083 = vadd.f32 %v1081, %v1082
    %v1084 = vsel %vm204, %v997, 0.0
    %v1085 = vadd.f32 %v1083, %v1084
    %v1086 = vsel %vm204, %v998, 0.0
    %v1087 = vadd.f32 %v1085, %v1086
    %v1088 = vsel %vm204, %v999, 0.0
    %v1089 = vadd.f32 %v1087, %v1088
    %v1090 = vsel %vm204, %v1000, 0.0
    %v1091 = vadd.f32 %v1089, %v1090
    %v1092 = vsel %vm204, %v1001, 0.0
    %v1093 = vadd.f32 %v1091, %v1092
    %v1094 = vsel %vm204, %v1002, 0.0
    %v1095 = vadd.f32 %v1093, %v1094
    %v1096 = vsel %vm204, %v1003, 0.0
    %v1097 = vadd.f32 %v1095, %v1096
    %v1098 = vsel %vm204, %v1004, 0.0
    %v1099 = vadd.f32 %v1097, %v1098
    %v1100 = vsel %vm204, %v1005, 0.0
    %v1101 = vadd.f32 %v1099, %v1100
    %v1102 = vsel %vm204, %v1006, 0.0
    %v1103 = vadd.f32 %v1101, %v1102
    %v1104 = vsel %vm204, %v1007, 0.0
    %v1105 = vadd.f32 %v1103, %v1104
    %v1106 = vsel %vm204, %v1008, 0.0
    %v1107 = vadd.f32 %v1105, %v1106
    %v1108 = vsel %vm204, %v1009, 0.0
    %v1109 = vadd.f32 %v1107, %v1108
    %v1110 = vsel %vm204, %v1010, 0.0
    %v1111 = vadd.f32 %v1109, %v1110
    %v1112 = vsel %vm204, %v1011, 0.0
    %v1113 = vadd.f32 %v1111, %v1112
    %v1114 = vsel %vm204, %v1012, 0.0
    %v1115 = vadd.f32 %v1113, %v1114
    %v1116 = vsel %vm204, %v1013, 0.0
    %v1117 = vadd.f32 %v1115, %v1116
    %v1118 = vsel %vm204, %v1014, 0.0
    %v1119 = vadd.f32 %v1117, %v1118
    %v1120 = vsel %vm204, %v1015, 0.0
    %v1121 = vadd.f32 %v1119, %v1120
    %v1122 = vsel %vm204, %v1016, 0.0
    %v1123 = vadd.f32 %v1121, %v1122
    %v1124 = vsel %vm204, %v1017, 0.0
    %v1125 = vadd.f32 %v1123, %v1124
    %v1126 = vsel %vm204, %v1018, 0.0
    %v1127 = vadd.f32 %v1125, %v1126
    %v1128 = vsel %vm204, %v1019, 0.0
    %v1129 = vadd.f32 %v1127, %v1128
    %v1130 = vsel %vm204, %v1020, 0.0
    %v1131 = vadd.f32 %v1129, %v1130
    %v1132 = vsel %vm204, %v1021, 0.0
    %v1133 = vadd.f32 %v1131, %v1132
    %v1134 = vsel %vm204, %v1022, 0.0
    %v1135 = vadd.f32 %v1133, %v1134
    %v1136 = vsel %vm204, %v1023, 0.0
    %v1137 = vadd.f32 %v1135, %v1136
    %v1138 = vsel %vm204, %v1024, 0.0
    %v1139 = vadd.f32 %v1137, %v1138
    %v1140 = vsel %vm204, %v1025, 0.0
    %v1141 = vadd.f32 %v1139, %v1140
    %v1142 = vsel %vm204, %v1026, 0.0
    %v1143 = vadd.f32 %v1141, %v1142
    %v1144 = vsel %vm204, %v1027, 0.0
    %v1145 = vadd.f32 %v1143, %v1144
    %v1146 = vsel %vm204, %v1028, 0.0
    %v1147 = vadd.f32 %v1145, %v1146
    %v1148 = vsel %vm204, %v1029, 0.0
    %v1149 = vadd.f32 %v1147, %v1148
    %v1150 = vsel %vm204, %v1030, 0.0
    %v1151 = vadd.f32 %v1149, %v1150
    %v1152 = vsel %vm204, %v1031, 0.0
    %v1153 = vadd.f32 %v1151, %v1152
    %v1154 = vsel %vm204, %v1032, 0.0
    %v1155 = vadd.f32 %v1153, %v1154
    %v1156 = vsel %vm204, %v1033, 0.0
    %v1157 = vadd.f32 %v1155, %v1156
    %v1158 = vsel %vm204, %v1034, 0.0
    %v1159 = vadd.f32 %v1157, %v1158
    %v1160 = vsel %vm204, %v1035, 0.0
    %v1161 = vadd.f32 %v1159, %v1160
    %v1162 = vsel %vm204, %v1036, 0.0
    %v1163 = vadd.f32 %v1161, %v1162
    %1164 = vadd.xlane.f32.xlu0 %v1163
    %v1165 = vpop.xlane.xlu0 %1164
    %v1166 = vrot.slane %v1165, 4
    %v1167 = vadd.f32 %v1165, %v1166
    %v1168 = vrot.slane %v1167, 2
    %v1169 = vadd.f32 %v1167, %v1168
    %v1170 = vrot.slane %v1169, 1
    %v1171 = vadd.f32 %v1169, %v1170
    %s1172 = vtos %v1171
    %s1173 = ssub.f32 0.0, %s1172
    %v1174 = vstv %s1173
    %vm1175 = vcmask 0
    %1176 = vst.msk [vmem:[#allocation2] sm:$0x1] %vm1175, %v1174
    // Predicated region
    $region10: #{tpu_custom_call.1} parent=1 // pred_check
      _
    $region11: #{tpu_custom_call.1} parent=1 // pred_check_branch
      %1178 = sbr.rel (0) target = $region13
    $region12: #{tpu_custom_call.1} parent=1 // pred_region
      %1180 = vsyncadd [#allocation3], 0
      %s1182 = sshll.u32 [#allocation2], 4
      %s1183 = int_to_ptr.vmem [resolvable:$true] %s1182
      %s1184 = sshll.u32 %s2, 4
      %s1185 = int_to_ptr.hbm [resolvable:$true] %s1184
      %1187 = dma.vmem_to_hbm [thread:$0]  %s1183, 16, %s1185, [#allocation3]
    $region13: #{tpu_custom_call.1} parent=1 // pred_fallthru
      _
    // Predicated region
    $region14: #{tpu_custom_call.1} parent=1 // pred_check
      _
    $region15: #{tpu_custom_call.1} parent=1 // pred_check_branch
      %1189 = sbr.rel (0) target = $region17
    $region16: #{tpu_custom_call.1} parent=1 // pred_region
      %1191 = dma.done [#allocation3], 16
    $region17: #{tpu_custom_call.1} parent=1 // pred_fallthru
      _
    %1192 = vsyncpa [#allocation3], 1

</llo_original>
